<compile_context>
chip_gen: v7x
topology: tpu7x:2x2x1
jax: 0.10.0
libtpu: 0.0.40
codegen_flags: <defaults>
</compile_context>

<pallas_src>
import jax
import jax.numpy as jnp
from jax import lax
from jax.experimental import pallas as pl
from jax.experimental.pallas import tpu as pltpu


# ----------------------------------------------------------------------------
# Fused kernel
# ----------------------------------------------------------------------------
def _roll_rows(v, shift):
    """jnp.roll semantics along axis 0 with a guaranteed non-negative shift."""
    return pltpu.roll(v, shift % v.shape[0], 0)


def _fewshot_kernel(*refs):
    """Fused forward pass.

    refs = (x_ref, w0, b0, w1, b1, w2, b2, w3, b3, o_ref, scr0..scr3)
      x_ref : (L0, 2*Cin0)  both samples packed on lanes (sample-major halves)
      w_i   : (2*Cin_i, 3*2*Cout_i) block-diagonal, tap-stacked conv weights
      b_i   : (1, 2*Cout_i) packed bias
      o_ref : (1, 1) sigmoid(l2dist / 2) output
      scr_i : (L_i, 2*Cout_i) VMEM scratch for layer i's conv output so the
              stride-2 pooling windows can be read back as strided loads.
    """
    n_layers = (len(refs) - 2) // 3
    x_ref = refs[0]
    o_ref = refs[1 + 2 * n_layers]
    layer_refs = [(refs[1 + 2 * i], refs[2 + 2 * i]) for i in range(n_layers)]
    pool_scr = refs[2 + 2 * n_layers:]

    x = x_ref[...]                                     # (L, 2*Cin) lane-packed
    for (w_ref, b_ref), yscr in zip(layer_refs, pool_scr):
        rows = x.shape[0]                              # per-sample length L
        cout2 = b_ref.shape[1]                         # 2*Cout (both samples)

        # ---- Conv1d(k=3, padding=1): ONE tap-stacked MXU matmul -------------
        # u[:, t*cout2:(t+1)*cout2] = x @ Wbd_t ;  y[l] = u0[l-1]+u1[l]+u2[l+1]+b
        # Zero padding realized with sublane rolls + boundary-row masks.
        u = jnp.dot(x, w_ref[...], preferred_element_type=jnp.float32)
        ridx = lax.broadcasted_iota(jnp.int32, (rows, 1), 0)
        y = u[:, cout2:2 * cout2] + b_ref[...]                 # center tap + bias
        left = _roll_rows(u[:, :cout2], 1)                     # u0[l-1]
        y = y + jnp.where(ridx == 0, 0.0, left)
        right = _roll_rows(u[:, 2 * cout2:], -1)               # u2[l+1]
        y = y + jnp.where(ridx == rows - 1, 0.0, right)        # (L, cout2)

        # ---- MaxPool1d(k=3, stride=2, padding=1) ----------------------------
        # One bulk store, two stride-2 sublane loads; the y[2q-1] window term
        # is a roll of the odd view (only q==0 touches the -inf padding).
        yscr[...] = y
        lout = rows // 2
        even = yscr[pl.ds(0, lout, stride=2), :]               # y[2q]
        odd = yscr[pl.ds(1, lout, stride=2), :]                # y[2q+1]
        prev = _roll_rows(odd, 1)                              # y[2q-1]
        pidx = lax.broadcasted_iota(jnp.int32, (lout, 1), 0)
        prev = jnp.where(pidx == 0, -jnp.inf, prev)
        x = jnp.maximum(jnp.maximum(even, odd), prev)          # (L//2, cout2)

    # ---- sigmoid( ||f0 - f1||^2 / 2 ): samples are the two lane halves ------
    ch = x.shape[1] // 2
    diff = x[:, :ch] - x[:, ch:]
    s = jnp.sum(diff * diff, axis=1, keepdims=True)            # (L_final, 1)
    s = 0.5 * jnp.sum(s, axis=0, keepdims=True)                # (1, 1)
    o_ref[...] = 1.0 / (1.0 + jnp.exp(-s))


# ----------------------------------------------------------------------------
# pallas_call wrapper
# ----------------------------------------------------------------------------
def _full_block(shape):
    nd = len(shape)
    return pl.BlockSpec(tuple(shape), lambda i: (0,) * nd)


def fewshot_forward_pallas(x2d, packed_params):
    """x2d: (L, 2*Cin) lane-packed slab; packed_params: list of
    (w=(2Cin, 3*2Cout) block-diag tap-stacked, b=(1, 2Cout))."""
    in_specs = [_full_block(x2d.shape)]
    args = [x2d]
    scratch_shapes = []
    rows = x2d.shape[0]
    for w, b in packed_params:
        in_specs += [_full_block(w.shape), _full_block(b.shape)]
        args += [w, b]
        scratch_shapes.append(pltpu.VMEM((rows, b.shape[1]), jnp.float32))
        rows //= 2

    n_inputs = len(args)
    return pl.pallas_call(
        _fewshot_kernel,
        out_shape=jax.ShapeDtypeStruct((1, 1), jnp.float32),
        grid=(1,),
        in_specs=in_specs,
        out_specs=_full_block((1, 1)),
        scratch_shapes=scratch_shapes,
        compiler_params=pltpu.CompilerParams(
            dimension_semantics=("arbitrary",),
            # Total footprint is < 1 MiB; 12 MiB keeps a large margin while
            # staying below every generation's scoped-VMEM default (incl. v7x).
            vmem_limit_bytes=12 * 1024 * 1024,
            # Let XLA fuse the tiny (2,C,L)->(L,2C) transpose/reshape producer
            # into the pallas_call input instead of a standalone HBM round-trip.
            allow_input_fusion=[True] + [False] * (n_inputs - 1),
        ),
    )(*args)


@jax.jit
def fewshot_cnn_forward(x_ncl, packed_params):
    assert x_ncl.shape[0] == 2            # matches the module's assert x.size(0) == 2
    n, c, l = x_ncl.shape
    assert l % (2 ** len(packed_params)) == 0
    # Lane-pack both samples: (L, 2*C), sample-major halves on the lane axis.
    # (Tiny op; allow_input_fusion lets XLA fold it into the kernel's input.)
    x2d = jnp.transpose(x_ncl, (2, 0, 1)).reshape(l, n * c).astype(jnp.float32)
    # torch flattens (c, l); the L2 head is permutation-invariant over features
    # so the (l, c) / lane-packed ordering used here gives the identical scalar.
    return fewshot_forward_pallas(x2d, packed_params)[0, 0]


# ----------------------------------------------------------------------------
# Parameters: raw init, host-side packing, pure-JAX reference
# ----------------------------------------------------------------------------
def init_params(key, in_channels):
    """Deterministic synthetic weights for the 4 ConvMaxpool layers."""
    params = []
    c = in_channels
    for _ in range(4):
        cin, cout = c, 2 * c
        key, kw, kb = jax.random.split(key, 3)
        w = 0.1 * jax.random.normal(kw, (3, cin, cout), jnp.float32)   # (tap, Cin, Cout)
        b = 0.01 * jax.random.normal(kb, (1, cout), jnp.float32)
        params.append((w, b))
        c = cout
    # NOTE: the PyTorch module also owns nn.Linear(1, 1) but never uses it in
    # forward(), so it is intentionally omitted here.
    return params


def pack_params(params):
    """Host-side (once, outside jit): block-diagonalize per tap for the
    two lane-packed samples and stack the 3 taps along the output axis."""
    packed = []
    for w, b in params:                      # w: (3, cin, cout), b: (1, cout)
        _, cin, cout = w.shape
        z = jnp.zeros((cin, cout), w.dtype)
        taps = []
        for t in range(w.shape[0]):
            bd = jnp.concatenate(
                [jnp.concatenate([w[t], z], axis=1),
                 jnp.concatenate([z, w[t]], axis=1)], axis=0)   # (2cin, 2cout)
            taps.append(bd)
        w_stacked = jnp.concatenate(taps, axis=1)               # (2cin, 3*2cout)
        b_packed = jnp.concatenate([b, b], axis=1)              # (1, 2cout)
        packed.append((w_stacked, b_packed))
    return packed


def ref_forward(x_ncl, params):
    """Pure-JAX reference of the PyTorch forward."""
    y = x_ncl.astype(jnp.float32)
    for w, b in params:
        wt = jnp.transpose(w, (2, 1, 0))  # (Cout, Cin, k) like torch
        y = jax.lax.conv_general_dilated(
            y, wt, window_strides=(1,), padding=((1, 1),),
            dimension_numbers=("NCH", "OIH", "NCH"))
        y = y + b.reshape(1, -1, 1)
        y = jax.lax.reduce_window(
            y, -jnp.inf, jax.lax.max,
            window_dimensions=(1, 1, 3), window_strides=(1, 1, 2),
            padding=((0, 0), (0, 0), (1, 1)))
    f = y.reshape(2, -1)
    dist = 0.5 * jnp.sum((f[0] - f[1]) ** 2)
    return jax.nn.sigmoid(dist)


# ----------------------------------------------------------------------------
# Self-test
# ----------------------------------------------------------------------------
if __name__ == "__main__":
    key = jax.random.PRNGKey(0)
    kx, kp = jax.random.split(key)

    # Shapes from the module spec: x = torch.randn(2, 2, 256)
    in_channels, length = 2, 256
    x = jax.random.normal(kx, (2, in_channels, length), jnp.float32)
    params = init_params(kp, in_channels)
    packed = pack_params(params)               # host-side, once, outside jit

    out = fewshot_cnn_forward(x, packed)
    out = jax.block_until_ready(out)

    ref = ref_forward(x, params)
    assert jnp.allclose(out, ref, rtol=1e-4, atol=1e-5), (out, ref)
    print("KERNEL_OK")
</pallas_src>

<mosaic_0001>
module attributes {stable_mosaic.version = 11 : i64} {
  func.func @_fewshot_kernel(%arg0: i32, %arg1: memref<256x4xf32, #tpu.memory_space<vmem>>, %arg2: memref<4x24xf32, #tpu.memory_space<vmem>>, %arg3: memref<1x8xf32, #tpu.memory_space<vmem>>, %arg4: memref<8x48xf32, #tpu.memory_space<vmem>>, %arg5: memref<1x16xf32, #tpu.memory_space<vmem>>, %arg6: memref<16x96xf32, #tpu.memory_space<vmem>>, %arg7: memref<1x32xf32, #tpu.memory_space<vmem>>, %arg8: memref<32x192xf32, #tpu.memory_space<vmem>>, %arg9: memref<1x64xf32, #tpu.memory_space<vmem>>, %arg10: memref<1x1xf32, #tpu.memory_space<vmem>>, %arg11: memref<256x8xf32, #tpu.memory_space<vmem>>, %arg12: memref<128x16xf32, #tpu.memory_space<vmem>>, %arg13: memref<64x32xf32, #tpu.memory_space<vmem>>, %arg14: memref<32x64xf32, #tpu.memory_space<vmem>>) attributes {dimension_semantics = [#tpu.dimension_semantics<arbitrary>], iteration_bounds = array<i64: 1>, scalar_prefetch = 0 : i64, scratch_operands = 4 : i64, tpu.core_type = #tpu.core_type<tc>, window_params = [{pipeline_mode = #tpu.pipeline_mode<synchronous>, transform_indices = @transform_0, window_bounds = array<i64: 256, 4>}, {pipeline_mode = #tpu.pipeline_mode<synchronous>, transform_indices = @transform_1, window_bounds = array<i64: 4, 24>}, {pipeline_mode = #tpu.pipeline_mode<synchronous>, transform_indices = @transform_2, window_bounds = array<i64: 1, 8>}, {pipeline_mode = #tpu.pipeline_mode<synchronous>, transform_indices = @transform_3, window_bounds = array<i64: 8, 48>}, {pipeline_mode = #tpu.pipeline_mode<synchronous>, transform_indices = @transform_4, window_bounds = array<i64: 1, 16>}, {pipeline_mode = #tpu.pipeline_mode<synchronous>, transform_indices = @transform_5, window_bounds = array<i64: 16, 96>}, {pipeline_mode = #tpu.pipeline_mode<synchronous>, transform_indices = @transform_6, window_bounds = array<i64: 1, 32>}, {pipeline_mode = #tpu.pipeline_mode<synchronous>, transform_indices = @transform_7, window_bounds = array<i64: 32, 192>}, {pipeline_mode = #tpu.pipeline_mode<synchronous>, transform_indices = @transform_8, window_bounds = array<i64: 1, 64>}, {pipeline_mode = #tpu.pipeline_mode<synchronous>, transform_indices = @transform_9, window_bounds = array<i64: 1, 1>}]} {
    %c0 = arith.constant 0 : index
    %c0_0 = arith.constant 0 : index
    %0 = vector.load %arg1[%c0, %c0_0] : memref<256x4xf32, #tpu.memory_space<vmem>>, vector<256x4xf32>
    %c0_1 = arith.constant 0 : index
    %c0_2 = arith.constant 0 : index
    %1 = vector.load %arg2[%c0_1, %c0_2] : memref<4x24xf32, #tpu.memory_space<vmem>>, vector<4x24xf32>
    %cst = arith.constant dense<0.000000e+00> : vector<256x24xf32>
    %2 = tpu.matmul %0, %1, %cst {dimension_numbers = #tpu.dot_dimension_numbers<[1], [0], [0], [1], [0, 0, 1, 1], [], []>} : vector<256x4xf32>, vector<4x24xf32>, vector<256x24xf32> -> vector<256x24xf32>
    %3 = tpu.iota {dimensions = array<i32: 0>} : vector<256x1xi32>
    %4 = vector.extract_strided_slice %2 {offsets = [0, 8], sizes = [256, 8], strides = [1, 1]} : vector<256x24xf32> to vector<256x8xf32>
    %c0_3 = arith.constant 0 : index
    %c0_4 = arith.constant 0 : index
    %5 = vector.load %arg3[%c0_3, %c0_4] : memref<1x8xf32, #tpu.memory_space<vmem>>, vector<1x8xf32>
    %6 = vector.broadcast %5 : vector<1x8xf32> to vector<256x8xf32>
    %7 = arith.addf %4, %6 : vector<256x8xf32>
    %8 = vector.extract_strided_slice %2 {offsets = [0, 0], sizes = [256, 8], strides = [1, 1]} : vector<256x24xf32> to vector<256x8xf32>
    %c1_i32 = arith.constant 1 : i32
    %9 = tpu.dynamic_rotate %8 by %c1_i32 dim 0 : vector<256x8xf32>, i32 -> vector<256x8xf32>
    %c0_i32 = arith.constant 0 : i32
    %10 = vector.broadcast %c0_i32 : i32 to vector<256x1xi32>
    %11 = arith.cmpi eq, %3, %10 : vector<256x1xi32>
    %cst_5 = arith.constant 0.000000e+00 : f32
    %12 = vector.shape_cast %11 : vector<256x1xi1> to vector<256x1xi1>
    %13 = vector.broadcast %12 : vector<256x1xi1> to vector<256x8xi1>
    %14 = vector.broadcast %cst_5 : f32 to vector<256x8xf32>
    %15 = arith.select %13, %14, %9 : vector<256x8xi1>, vector<256x8xf32>
    %16 = arith.addf %7, %15 : vector<256x8xf32>
    %17 = vector.extract_strided_slice %2 {offsets = [0, 16], sizes = [256, 8], strides = [1, 1]} : vector<256x24xf32> to vector<256x8xf32>
    %c255_i32 = arith.constant 255 : i32
    %18 = tpu.dynamic_rotate %17 by %c255_i32 dim 0 : vector<256x8xf32>, i32 -> vector<256x8xf32>
    %c255_i32_6 = arith.constant 255 : i32
    %19 = vector.broadcast %c255_i32_6 : i32 to vector<256x1xi32>
    %20 = arith.cmpi eq, %3, %19 : vector<256x1xi32>
    %cst_7 = arith.constant 0.000000e+00 : f32
    %21 = vector.shape_cast %20 : vector<256x1xi1> to vector<256x1xi1>
    %22 = vector.broadcast %21 : vector<256x1xi1> to vector<256x8xi1>
    %23 = vector.broadcast %cst_7 : f32 to vector<256x8xf32>
    %24 = arith.select %22, %23, %18 : vector<256x8xi1>, vector<256x8xf32>
    %25 = arith.addf %16, %24 : vector<256x8xf32>
    %c0_8 = arith.constant 0 : index
    %c0_9 = arith.constant 0 : index
    %26 = vector.load %arg11[%c0_8, %c0_9] : memref<256x8xf32, #tpu.memory_space<vmem>>, vector<256x8xf32>
    tpu.vector_store %arg11[%c0_8, %c0_9], %25 {strides = array<i32>} : memref<256x8xf32, #tpu.memory_space<vmem>>, vector<256x8xf32>,
    %c0_10 = arith.constant 0 : index
    %c0_11 = arith.constant 0 : index
    %27 = tpu.strided_load %arg11[%c0_10, %c0_11] {strides = array<i32: 2, 1>} : memref<256x8xf32, #tpu.memory_space<vmem>>, vector<128x8xf32>
    %c1 = arith.constant 1 : index
    %c0_12 = arith.constant 0 : index
    %28 = tpu.strided_load %arg11[%c1, %c0_12] {strides = array<i32: 2, 1>} : memref<256x8xf32, #tpu.memory_space<vmem>>, vector<128x8xf32>
    %c1_i32_13 = arith.constant 1 : i32
    %29 = tpu.dynamic_rotate %28 by %c1_i32_13 dim 0 : vector<128x8xf32>, i32 -> vector<128x8xf32>
    %30 = tpu.iota {dimensions = array<i32: 0>} : vector<128x1xi32>
    %c0_i32_14 = arith.constant 0 : i32
    %31 = vector.broadcast %c0_i32_14 : i32 to vector<128x1xi32>
    %32 = arith.cmpi eq, %30, %31 : vector<128x1xi32>
    %cst_15 = arith.constant 0xFF800000 : f32
    %33 = vector.shape_cast %32 : vector<128x1xi1> to vector<128x1xi1>
    %34 = vector.broadcast %33 : vector<128x1xi1> to vector<128x8xi1>
    %35 = vector.broadcast %cst_15 : f32 to vector<128x8xf32>
    %36 = arith.select %34, %35, %29 : vector<128x8xi1>, vector<128x8xf32>
    %37 = arith.maximumf %27, %28 : vector<128x8xf32>
    %38 = arith.maximumf %37, %36 : vector<128x8xf32>
    %c0_16 = arith.constant 0 : index
    %c0_17 = arith.constant 0 : index
    %39 = vector.load %arg4[%c0_16, %c0_17] : memref<8x48xf32, #tpu.memory_space<vmem>>, vector<8x48xf32>
    %cst_18 = arith.constant dense<0.000000e+00> : vector<128x48xf32>
    %40 = tpu.matmul %38, %39, %cst_18 {dimension_numbers = #tpu.dot_dimension_numbers<[1], [0], [0], [1], [0, 0, 1, 1], [], []>} : vector<128x8xf32>, vector<8x48xf32>, vector<128x48xf32> -> vector<128x48xf32>
    %41 = tpu.iota {dimensions = array<i32: 0>} : vector<128x1xi32>
    %42 = vector.extract_strided_slice %40 {offsets = [0, 16], sizes = [128, 16], strides = [1, 1]} : vector<128x48xf32> to vector<128x16xf32>
    %c0_19 = arith.constant 0 : index
    %c0_20 = arith.constant 0 : index
    %43 = vector.load %arg5[%c0_19, %c0_20] : memref<1x16xf32, #tpu.memory_space<vmem>>, vector<1x16xf32>
    %44 = vector.broadcast %43 : vector<1x16xf32> to vector<128x16xf32>
    %45 = arith.addf %42, %44 : vector<128x16xf32>
    %46 = vector.extract_strided_slice %40 {offsets = [0, 0], sizes = [128, 16], strides = [1, 1]} : vector<128x48xf32> to vector<128x16xf32>
    %c1_i32_21 = arith.constant 1 : i32
    %47 = tpu.dynamic_rotate %46 by %c1_i32_21 dim 0 : vector<128x16xf32>, i32 -> vector<128x16xf32>
    %c0_i32_22 = arith.constant 0 : i32
    %48 = vector.broadcast %c0_i32_22 : i32 to vector<128x1xi32>
    %49 = arith.cmpi eq, %41, %48 : vector<128x1xi32>
    %cst_23 = arith.constant 0.000000e+00 : f32
    %50 = vector.shape_cast %49 : vector<128x1xi1> to vector<128x1xi1>
    %51 = vector.broadcast %50 : vector<128x1xi1> to vector<128x16xi1>
    %52 = vector.broadcast %cst_23 : f32 to vector<128x16xf32>
    %53 = arith.select %51, %52, %47 : vector<128x16xi1>, vector<128x16xf32>
    %54 = arith.addf %45, %53 : vector<128x16xf32>
    %55 = vector.extract_strided_slice %40 {offsets = [0, 32], sizes = [128, 16], strides = [1, 1]} : vector<128x48xf32> to vector<128x16xf32>
    %c127_i32 = arith.constant 127 : i32
    %56 = tpu.dynamic_rotate %55 by %c127_i32 dim 0 : vector<128x16xf32>, i32 -> vector<128x16xf32>
    %c127_i32_24 = arith.constant 127 : i32
    %57 = vector.broadcast %c127_i32_24 : i32 to vector<128x1xi32>
    %58 = arith.cmpi eq, %41, %57 : vector<128x1xi32>
    %cst_25 = arith.constant 0.000000e+00 : f32
    %59 = vector.shape_cast %58 : vector<128x1xi1> to vector<128x1xi1>
    %60 = vector.broadcast %59 : vector<128x1xi1> to vector<128x16xi1>
    %61 = vector.broadcast %cst_25 : f32 to vector<128x16xf32>
    %62 = arith.select %60, %61, %56 : vector<128x16xi1>, vector<128x16xf32>
    %63 = arith.addf %54, %62 : vector<128x16xf32>
    %c0_26 = arith.constant 0 : index
    %c0_27 = arith.constant 0 : index
    %64 = vector.load %arg12[%c0_26, %c0_27] : memref<128x16xf32, #tpu.memory_space<vmem>>, vector<128x16xf32>
    tpu.vector_store %arg12[%c0_26, %c0_27], %63 {strides = array<i32>} : memref<128x16xf32, #tpu.memory_space<vmem>>, vector<128x16xf32>,
    %c0_28 = arith.constant 0 : index
    %c0_29 = arith.constant 0 : index
    %65 = tpu.strided_load %arg12[%c0_28, %c0_29] {strides = array<i32: 2, 1>} : memref<128x16xf32, #tpu.memory_space<vmem>>, vector<64x16xf32>
    %c1_30 = arith.constant 1 : index
    %c0_31 = arith.constant 0 : index
    %66 = tpu.strided_load %arg12[%c1_30, %c0_31] {strides = array<i32: 2, 1>} : memref<128x16xf32, #tpu.memory_space<vmem>>, vector<64x16xf32>
    %c1_i32_32 = arith.constant 1 : i32
    %67 = tpu.dynamic_rotate %66 by %c1_i32_32 dim 0 : vector<64x16xf32>, i32 -> vector<64x16xf32>
    %68 = tpu.iota {dimensions = array<i32: 0>} : vector<64x1xi32>
    %c0_i32_33 = arith.constant 0 : i32
    %69 = vector.broadcast %c0_i32_33 : i32 to vector<64x1xi32>
    %70 = arith.cmpi eq, %68, %69 : vector<64x1xi32>
    %cst_34 = arith.constant 0xFF800000 : f32
    %71 = vector.shape_cast %70 : vector<64x1xi1> to vector<64x1xi1>
    %72 = vector.broadcast %71 : vector<64x1xi1> to vector<64x16xi1>
    %73 = vector.broadcast %cst_34 : f32 to vector<64x16xf32>
    %74 = arith.select %72, %73, %67 : vector<64x16xi1>, vector<64x16xf32>
    %75 = arith.maximumf %65, %66 : vector<64x16xf32>
    %76 = arith.maximumf %75, %74 : vector<64x16xf32>
    %c0_35 = arith.constant 0 : index
    %c0_36 = arith.constant 0 : index
    %77 = vector.load %arg6[%c0_35, %c0_36] : memref<16x96xf32, #tpu.memory_space<vmem>>, vector<16x96xf32>
    %cst_37 = arith.constant dense<0.000000e+00> : vector<64x96xf32>
    %78 = tpu.matmul %76, %77, %cst_37 {dimension_numbers = #tpu.dot_dimension_numbers<[1], [0], [0], [1], [0, 0, 1, 1], [], []>} : vector<64x16xf32>, vector<16x96xf32>, vector<64x96xf32> -> vector<64x96xf32>
    %79 = tpu.iota {dimensions = array<i32: 0>} : vector<64x1xi32>
    %80 = vector.extract_strided_slice %78 {offsets = [0, 32], sizes = [64, 32], strides = [1, 1]} : vector<64x96xf32> to vector<64x32xf32>
    %c0_38 = arith.constant 0 : index
    %c0_39 = arith.constant 0 : index
    %81 = vector.load %arg7[%c0_38, %c0_39] : memref<1x32xf32, #tpu.memory_space<vmem>>, vector<1x32xf32>
    %82 = vector.broadcast %81 : vector<1x32xf32> to vector<64x32xf32>
    %83 = arith.addf %80, %82 : vector<64x32xf32>
    %84 = vector.extract_strided_slice %78 {offsets = [0, 0], sizes = [64, 32], strides = [1, 1]} : vector<64x96xf32> to vector<64x32xf32>
    %c1_i32_40 = arith.constant 1 : i32
    %85 = tpu.dynamic_rotate %84 by %c1_i32_40 dim 0 : vector<64x32xf32>, i32 -> vector<64x32xf32>
    %c0_i32_41 = arith.constant 0 : i32
    %86 = vector.broadcast %c0_i32_41 : i32 to vector<64x1xi32>
    %87 = arith.cmpi eq, %79, %86 : vector<64x1xi32>
    %cst_42 = arith.constant 0.000000e+00 : f32
    %88 = vector.shape_cast %87 : vector<64x1xi1> to vector<64x1xi1>
    %89 = vector.broadcast %88 : vector<64x1xi1> to vector<64x32xi1>
    %90 = vector.broadcast %cst_42 : f32 to vector<64x32xf32>
    %91 = arith.select %89, %90, %85 : vector<64x32xi1>, vector<64x32xf32>
    %92 = arith.addf %83, %91 : vector<64x32xf32>
    %93 = vector.extract_strided_slice %78 {offsets = [0, 64], sizes = [64, 32], strides = [1, 1]} : vector<64x96xf32> to vector<64x32xf32>
    %c63_i32 = arith.constant 63 : i32
    %94 = tpu.dynamic_rotate %93 by %c63_i32 dim 0 : vector<64x32xf32>, i32 -> vector<64x32xf32>
    %c63_i32_43 = arith.constant 63 : i32
    %95 = vector.broadcast %c63_i32_43 : i32 to vector<64x1xi32>
    %96 = arith.cmpi eq, %79, %95 : vector<64x1xi32>
    %cst_44 = arith.constant 0.000000e+00 : f32
    %97 = vector.shape_cast %96 : vector<64x1xi1> to vector<64x1xi1>
    %98 = vector.broadcast %97 : vector<64x1xi1> to vector<64x32xi1>
    %99 = vector.broadcast %cst_44 : f32 to vector<64x32xf32>
    %100 = arith.select %98, %99, %94 : vector<64x32xi1>, vector<64x32xf32>
    %101 = arith.addf %92, %100 : vector<64x32xf32>
    %c0_45 = arith.constant 0 : index
    %c0_46 = arith.constant 0 : index
    %102 = vector.load %arg13[%c0_45, %c0_46] : memref<64x32xf32, #tpu.memory_space<vmem>>, vector<64x32xf32>
    tpu.vector_store %arg13[%c0_45, %c0_46], %101 {strides = array<i32>} : memref<64x32xf32, #tpu.memory_space<vmem>>, vector<64x32xf32>,
    %c0_47 = arith.constant 0 : index
    %c0_48 = arith.constant 0 : index
    %103 = tpu.strided_load %arg13[%c0_47, %c0_48] {strides = array<i32: 2, 1>} : memref<64x32xf32, #tpu.memory_space<vmem>>, vector<32x32xf32>
    %c1_49 = arith.constant 1 : index
    %c0_50 = arith.constant 0 : index
    %104 = tpu.strided_load %arg13[%c1_49, %c0_50] {strides = array<i32: 2, 1>} : memref<64x32xf32, #tpu.memory_space<vmem>>, vector<32x32xf32>
    %c1_i32_51 = arith.constant 1 : i32
    %105 = tpu.dynamic_rotate %104 by %c1_i32_51 dim 0 : vector<32x32xf32>, i32 -> vector<32x32xf32>
    %106 = tpu.iota {dimensions = array<i32: 0>} : vector<32x1xi32>
    %c0_i32_52 = arith.constant 0 : i32
    %107 = vector.broadcast %c0_i32_52 : i32 to vector<32x1xi32>
    %108 = arith.cmpi eq, %106, %107 : vector<32x1xi32>
    %cst_53 = arith.constant 0xFF800000 : f32
    %109 = vector.shape_cast %108 : vector<32x1xi1> to vector<32x1xi1>
    %110 = vector.broadcast %109 : vector<32x1xi1> to vector<32x32xi1>
    %111 = vector.broadcast %cst_53 : f32 to vector<32x32xf32>
    %112 = arith.select %110, %111, %105 : vector<32x32xi1>, vector<32x32xf32>
    %113 = arith.maximumf %103, %104 : vector<32x32xf32>
    %114 = arith.maximumf %113, %112 : vector<32x32xf32>
    %c0_54 = arith.constant 0 : index
    %c0_55 = arith.constant 0 : index
    %115 = vector.load %arg8[%c0_54, %c0_55] : memref<32x192xf32, #tpu.memory_space<vmem>>, vector<32x192xf32>
    %cst_56 = arith.constant dense<0.000000e+00> : vector<32x192xf32>
    %116 = tpu.matmul %114, %115, %cst_56 {dimension_numbers = #tpu.dot_dimension_numbers<[1], [0], [0], [1], [0, 0, 1, 1], [], []>} : vector<32x32xf32>, vector<32x192xf32>, vector<32x192xf32> -> vector<32x192xf32>
    %117 = tpu.iota {dimensions = array<i32: 0>} : vector<32x1xi32>
    %118 = vector.extract_strided_slice %116 {offsets = [0, 64], sizes = [32, 64], strides = [1, 1]} : vector<32x192xf32> to vector<32x64xf32>
    %c0_57 = arith.constant 0 : index
    %c0_58 = arith.constant 0 : index
    %119 = vector.load %arg9[%c0_57, %c0_58] : memref<1x64xf32, #tpu.memory_space<vmem>>, vector<1x64xf32>
    %120 = vector.broadcast %119 : vector<1x64xf32> to vector<32x64xf32>
    %121 = arith.addf %118, %120 : vector<32x64xf32>
    %122 = vector.extract_strided_slice %116 {offsets = [0, 0], sizes = [32, 64], strides = [1, 1]} : vector<32x192xf32> to vector<32x64xf32>
    %c1_i32_59 = arith.constant 1 : i32
    %123 = tpu.dynamic_rotate %122 by %c1_i32_59 dim 0 : vector<32x64xf32>, i32 -> vector<32x64xf32>
    %c0_i32_60 = arith.constant 0 : i32
    %124 = vector.broadcast %c0_i32_60 : i32 to vector<32x1xi32>
    %125 = arith.cmpi eq, %117, %124 : vector<32x1xi32>
    %cst_61 = arith.constant 0.000000e+00 : f32
    %126 = vector.shape_cast %125 : vector<32x1xi1> to vector<32x1xi1>
    %127 = vector.broadcast %126 : vector<32x1xi1> to vector<32x64xi1>
    %128 = vector.broadcast %cst_61 : f32 to vector<32x64xf32>
    %129 = arith.select %127, %128, %123 : vector<32x64xi1>, vector<32x64xf32>
    %130 = arith.addf %121, %129 : vector<32x64xf32>
    %131 = vector.extract_strided_slice %116 {offsets = [0, 128], sizes = [32, 64], strides = [1, 1]} : vector<32x192xf32> to vector<32x64xf32>
    %c31_i32 = arith.constant 31 : i32
    %132 = tpu.dynamic_rotate %131 by %c31_i32 dim 0 : vector<32x64xf32>, i32 -> vector<32x64xf32>
    %c31_i32_62 = arith.constant 31 : i32
    %133 = vector.broadcast %c31_i32_62 : i32 to vector<32x1xi32>
    %134 = arith.cmpi eq, %117, %133 : vector<32x1xi32>
    %cst_63 = arith.constant 0.000000e+00 : f32
    %135 = vector.shape_cast %134 : vector<32x1xi1> to vector<32x1xi1>
    %136 = vector.broadcast %135 : vector<32x1xi1> to vector<32x64xi1>
    %137 = vector.broadcast %cst_63 : f32 to vector<32x64xf32>
    %138 = arith.select %136, %137, %132 : vector<32x64xi1>, vector<32x64xf32>
    %139 = arith.addf %130, %138 : vector<32x64xf32>
    %c0_64 = arith.constant 0 : index
    %c0_65 = arith.constant 0 : index
    %140 = vector.load %arg14[%c0_64, %c0_65] : memref<32x64xf32, #tpu.memory_space<vmem>>, vector<32x64xf32>
    tpu.vector_store %arg14[%c0_64, %c0_65], %139 {strides = array<i32>} : memref<32x64xf32, #tpu.memory_space<vmem>>, vector<32x64xf32>,
    %c0_66 = arith.constant 0 : index
    %c0_67 = arith.constant 0 : index
    %141 = tpu.strided_load %arg14[%c0_66, %c0_67] {strides = array<i32: 2, 1>} : memref<32x64xf32, #tpu.memory_space<vmem>>, vector<16x64xf32>
    %c1_68 = arith.constant 1 : index
    %c0_69 = arith.constant 0 : index
    %142 = tpu.strided_load %arg14[%c1_68, %c0_69] {strides = array<i32: 2, 1>} : memref<32x64xf32, #tpu.memory_space<vmem>>, vector<16x64xf32>
    %c1_i32_70 = arith.constant 1 : i32
    %143 = tpu.dynamic_rotate %142 by %c1_i32_70 dim 0 : vector<16x64xf32>, i32 -> vector<16x64xf32>
    %144 = tpu.iota {dimensions = array<i32: 0>} : vector<16x1xi32>
    %c0_i32_71 = arith.constant 0 : i32
    %145 = vector.broadcast %c0_i32_71 : i32 to vector<16x1xi32>
    %146 = arith.cmpi eq, %144, %145 : vector<16x1xi32>
    %cst_72 = arith.constant 0xFF800000 : f32
    %147 = vector.shape_cast %146 : vector<16x1xi1> to vector<16x1xi1>
    %148 = vector.broadcast %147 : vector<16x1xi1> to vector<16x64xi1>
    %149 = vector.broadcast %cst_72 : f32 to vector<16x64xf32>
    %150 = arith.select %148, %149, %143 : vector<16x64xi1>, vector<16x64xf32>
    %151 = arith.maximumf %141, %142 : vector<16x64xf32>
    %152 = arith.maximumf %151, %150 : vector<16x64xf32>
    %153 = vector.extract_strided_slice %152 {offsets = [0, 0], sizes = [16, 32], strides = [1, 1]} : vector<16x64xf32> to vector<16x32xf32>
    %154 = vector.extract_strided_slice %152 {offsets = [0, 32], sizes = [16, 32], strides = [1, 1]} : vector<16x64xf32> to vector<16x32xf32>
    %155 = arith.subf %153, %154 : vector<16x32xf32>
    %156 = arith.mulf %155, %155 : vector<16x32xf32>
    %cst_73 = arith.constant dense<0.000000e+00> : vector<16xf32>
    %157 = vector.multi_reduction <add>, %156, %cst_73 [1] : vector<16x32xf32> to vector<16xf32>
    %158 = vector.shape_cast %157 : vector<16xf32> to vector<16x1xf32>
    %cst_74 = arith.constant dense<0.000000e+00> : vector<1xf32>
    %159 = vector.multi_reduction <add>, %158, %cst_74 [0] : vector<16x1xf32> to vector<1xf32>
    %160 = vector.shape_cast %159 : vector<1xf32> to vector<1x1xf32>
    %cst_75 = arith.constant 5.000000e-01 : f32
    %161 = vector.broadcast %cst_75 : f32 to vector<1x1xf32>
    %162 = arith.mulf %161, %160 : vector<1x1xf32>
    %cst_76 = arith.constant 0.000000e+00 : f32
    %163 = vector.broadcast %cst_76 : f32 to vector<1x1xf32>
    %164 = arith.subf %163, %162 : vector<1x1xf32>
    %165 = math.exp %164 : vector<1x1xf32>
    %cst_77 = arith.constant 1.000000e+00 : f32
    %166 = vector.broadcast %cst_77 : f32 to vector<1x1xf32>
    %167 = arith.addf %166, %165 : vector<1x1xf32>
    %cst_78 = arith.constant 1.000000e+00 : f32
    %168 = vector.broadcast %cst_78 : f32 to vector<1x1xf32>
    %169 = arith.divf %168, %167 : vector<1x1xf32>
    %c0_79 = arith.constant 0 : index
    %c0_80 = arith.constant 0 : index
    %170 = vector.load %arg10[%c0_79, %c0_80] : memref<1x1xf32, #tpu.memory_space<vmem>>, vector<1x1xf32>
    tpu.vector_store %arg10[%c0_79, %c0_80], %169 {strides = array<i32>} : memref<1x1xf32, #tpu.memory_space<vmem>>, vector<1x1xf32>,
    return
  }
  func.func @transform_0(%arg0: i32) -> (i32, i32) {
    %c0_i32 = arith.constant 0 : i32
    %c0_i32_0 = arith.constant 0 : i32
    %c0_i32_1 = arith.constant 0 : i32
    return %c0_i32, %c0_i32_0 : i32, i32
  }
  func.func @transform_1(%arg0: i32) -> (i32, i32) {
    %c0_i32 = arith.constant 0 : i32
    %c0_i32_0 = arith.constant 0 : i32
    %c0_i32_1 = arith.constant 0 : i32
    return %c0_i32, %c0_i32_0 : i32, i32
  }
  func.func @transform_2(%arg0: i32) -> (i32, i32) {
    %c0_i32 = arith.constant 0 : i32
    %c0_i32_0 = arith.constant 0 : i32
    %c0_i32_1 = arith.constant 0 : i32
    return %c0_i32, %c0_i32_0 : i32, i32
  }
  func.func @transform_3(%arg0: i32) -> (i32, i32) {
    %c0_i32 = arith.constant 0 : i32
    %c0_i32_0 = arith.constant 0 : i32
    %c0_i32_1 = arith.constant 0 : i32
    return %c0_i32, %c0_i32_0 : i32, i32
  }
  func.func @transform_4(%arg0: i32) -> (i32, i32) {
    %c0_i32 = arith.constant 0 : i32
    %c0_i32_0 = arith.constant 0 : i32
    %c0_i32_1 = arith.constant 0 : i32
    return %c0_i32, %c0_i32_0 : i32, i32
  }
  func.func @transform_5(%arg0: i32) -> (i32, i32) {
    %c0_i32 = arith.constant 0 : i32
    %c0_i32_0 = arith.constant 0 : i32
    %c0_i32_1 = arith.constant 0 : i32
    return %c0_i32, %c0_i32_0 : i32, i32
  }
  func.func @transform_6(%arg0: i32) -> (i32, i32) {
    %c0_i32 = arith.constant 0 : i32
    %c0_i32_0 = arith.constant 0 : i32
    %c0_i32_1 = arith.constant 0 : i32
    return %c0_i32, %c0_i32_0 : i32, i32
  }
  func.func @transform_7(%arg0: i32) -> (i32, i32) {
    %c0_i32 = arith.constant 0 : i32
    %c0_i32_0 = arith.constant 0 : i32
    %c0_i32_1 = arith.constant 0 : i32
    return %c0_i32, %c0_i32_0 : i32, i32
  }
  func.func @transform_8(%arg0: i32) -> (i32, i32) {
    %c0_i32 = arith.constant 0 : i32
    %c0_i32_0 = arith.constant 0 : i32
    %c0_i32_1 = arith.constant 0 : i32
    return %c0_i32, %c0_i32_0 : i32, i32
  }
  func.func @transform_9(%arg0: i32) -> (i32, i32) {
    %c0_i32 = arith.constant 0 : i32
    %c0_i32_0 = arith.constant 0 : i32
    %c0_i32_1 = arith.constant 0 : i32
    return %c0_i32, %c0_i32_0 : i32, i32
  }
}

</mosaic_0001>

<llo_original>
// kernel: fewshot_cnn_forward.1
$region0: #{fewshot_cnn_forward.1}
  #allocation0 [shape = 'u32[]', space=smem, size = 0x4, offset = 0x4, fixed_abs, tag = 'smem constant byte address 0x4 - core index']
  #allocation1 [shape = 'u32[144,128]{1,0:T(1,128)}', space=vmem, size = 0x12000, scoped, tag = 'internal scratch']
  #allocation2 [shape = 'f32[256,8]{1,0:T(8,128)}', space=vmem, size = 0x20000, scoped, tag = 'scratch operand']
  #allocation3 [shape = 'f32[128,16]{1,0:T(8,128)}', space=vmem, size = 0x10000, scoped, tag = 'scratch operand']
  #allocation4 [shape = 'f32[64,32]{1,0:T(8,128)}', space=vmem, size = 0x8000, scoped, tag = 'scratch operand']
  #allocation5 [shape = 'f32[32,64]{1,0:T(8,128)}', space=vmem, size = 0x4000, scoped, tag = 'scratch operand']
  %s0 = inlined_call_operand.vmem [shape: f32[256,4], index: 0, kind: input, shape index: {}]
  %s1 = inlined_call_operand.vmem [shape: f32[4,24], index: 1, kind: input, shape index: {}]
  %s2 = inlined_call_operand.vmem [shape: f32[1,8], index: 2, kind: input, shape index: {}]
  %s3 = inlined_call_operand.vmem [shape: f32[8,48], index: 3, kind: input, shape index: {}]
  %s4 = inlined_call_operand.vmem [shape: f32[1,16], index: 4, kind: input, shape index: {}]
  %s5 = inlined_call_operand.vmem [shape: f32[16,96], index: 5, kind: input, shape index: {}]
  %s6 = inlined_call_operand.vmem [shape: f32[1,32], index: 6, kind: input, shape index: {}]
  %s7 = inlined_call_operand.vmem [shape: f32[32,192], index: 7, kind: input, shape index: {}]
  %s8 = inlined_call_operand.vmem [shape: f32[1,64], index: 8, kind: input, shape index: {}]
  %s9 = inlined_call_operand.hbm [shape: f32[1,1], index: 9, kind: output, shape index: {}]
  %s10 = sld [smem:[#allocation0]]
  $region46: #{fewshot_cnn_forward.1} parent=0
    _
  %s12 = ssub.s32 1, %s10
  %s13 = scalar_select 0, %s12, %s10
  $region1: #{fewshot_cnn_forward.1} parent=0
    #allocation6 [shape = 'u8[512]{0}', space=vmem, size = 0x400, scoped, tag = 'output window, operand 0, single buffered']
    #allocation7 [shape = 's32[1]{0}', space=sflag, size = 0x4, scoped, tag = 'scoped memory for fewshot_cnn_forward.1']
    %14 = vsyncpa [#allocation7], 0
    // Predicated region
    $region2: #{fewshot_cnn_forward.1} parent=1 // pred_check
      _
    $region3: #{fewshot_cnn_forward.1} parent=1 // pred_check_branch
      %16 = sbr.rel (0) target = $region5
    $region4: #{fewshot_cnn_forward.1} parent=1 // pred_region
      _
    $region5: #{fewshot_cnn_forward.1} parent=1 // pred_fallthru
      _
    // Predicated region
    $region6: #{fewshot_cnn_forward.1} parent=1 // pred_check
      _
    $region7: #{fewshot_cnn_forward.1} parent=1 // pred_check_branch
      %18 = sbr.rel (0) target = $region9
    $region8: #{fewshot_cnn_forward.1} parent=1 // pred_region
      _
    $region9: #{fewshot_cnn_forward.1} parent=1 // pred_fallthru
      _
    // Predicated region
    $region10: #{fewshot_cnn_forward.1} parent=1 // pred_check
      _
    $region11: #{fewshot_cnn_forward.1} parent=1 // pred_check_branch
      %20 = sbr.rel (0) target = $region13
    $region12: #{fewshot_cnn_forward.1} parent=1 // pred_region
      _
    $region13: #{fewshot_cnn_forward.1} parent=1 // pred_fallthru
      _
    // Predicated region
    $region14: #{fewshot_cnn_forward.1} parent=1 // pred_check
      _
    $region15: #{fewshot_cnn_forward.1} parent=1 // pred_check_branch
      %22 = sbr.rel (0) target = $region17
    $region16: #{fewshot_cnn_forward.1} parent=1 // pred_region
      _
    $region17: #{fewshot_cnn_forward.1} parent=1 // pred_fallthru
      _
    // Predicated region
    $region18: #{fewshot_cnn_forward.1} parent=1 // pred_check
      _
    $region19: #{fewshot_cnn_forward.1} parent=1 // pred_check_branch
      %24 = sbr.rel (0) target = $region21
    $region20: #{fewshot_cnn_forward.1} parent=1 // pred_region
      _
    $region21: #{fewshot_cnn_forward.1} parent=1 // pred_fallthru
      _
    // Predicated region
    $region22: #{fewshot_cnn_forward.1} parent=1 // pred_check
      _
    $region23: #{fewshot_cnn_forward.1} parent=1 // pred_check_branch
      %26 = sbr.rel (0) target = $region25
    $region24: #{fewshot_cnn_forward.1} parent=1 // pred_region
      _
    $region25: #{fewshot_cnn_forward.1} parent=1 // pred_fallthru
      _
    // Predicated region
    $region26: #{fewshot_cnn_forward.1} parent=1 // pred_check
      _
    $region27: #{fewshot_cnn_forward.1} parent=1 // pred_check_branch
      %28 = sbr.rel (0) target = $region29
    $region28: #{fewshot_cnn_forward.1} parent=1 // pred_region
      _
    $region29: #{fewshot_cnn_forward.1} parent=1 // pred_fallthru
      _
    // Predicated region
    $region30: #{fewshot_cnn_forward.1} parent=1 // pred_check
      _
    $region31: #{fewshot_cnn_forward.1} parent=1 // pred_check_branch
      %30 = sbr.rel (0) target = $region33
    $region32: #{fewshot_cnn_forward.1} parent=1 // pred_region
      _
    $region33: #{fewshot_cnn_forward.1} parent=1 // pred_fallthru
      _
    // Predicated region
    $region34: #{fewshot_cnn_forward.1} parent=1 // pred_check
      _
    $region35: #{fewshot_cnn_forward.1} parent=1 // pred_check_branch
      %32 = sbr.rel (0) target = $region37
    $region36: #{fewshot_cnn_forward.1} parent=1 // pred_region
      _
    $region37: #{fewshot_cnn_forward.1} parent=1 // pred_fallthru
      _
    %v33 = vld [vmem:[%s0] sm:$0xff]
    %v34 = vld [vmem:[%s0 + $0x8] sm:$0xff]
    %v35 = vld [vmem:[%s0 + $0x10] sm:$0xff]
    %v36 = vld [vmem:[%s0 + $0x18] sm:$0xff]
    %v37 = vld [vmem:[%s0 + $0x20] sm:$0xff]
    %v38 = vld [vmem:[%s0 + $0x28] sm:$0xff]
    %v39 = vld [vmem:[%s0 + $0x30] sm:$0xff]
    %v40 = vld [vmem:[%s0 + $0x38] sm:$0xff]
    %v41 = vld [vmem:[%s0 + $0x40] sm:$0xff]
    %v42 = vld [vmem:[%s0 + $0x48] sm:$0xff]
    %v43 = vld [vmem:[%s0 + $0x50] sm:$0xff]
    %v44 = vld [vmem:[%s0 + $0x58] sm:$0xff]
    %v45 = vld [vmem:[%s0 + $0x60] sm:$0xff]
    %v46 = vld [vmem:[%s0 + $0x68] sm:$0xff]
    %v47 = vld [vmem:[%s0 + $0x70] sm:$0xff]
    %v48 = vld [vmem:[%s0 + $0x78] sm:$0xff]
    %v49 = vld [vmem:[%s0 + $0x80] sm:$0xff]
    %v50 = vld [vmem:[%s0 + $0x88] sm:$0xff]
    %v51 = vld [vmem:[%s0 + $0x90] sm:$0xff]
    %v52 = vld [vmem:[%s0 + $0x98] sm:$0xff]
    %v53 = vld [vmem:[%s0 + $0xa0] sm:$0xff]
    %v54 = vld [vmem:[%s0 + $0xa8] sm:$0xff]
    %v55 = vld [vmem:[%s0 + $0xb0] sm:$0xff]
    %v56 = vld [vmem:[%s0 + $0xb8] sm:$0xff]
    %v57 = vld [vmem:[%s0 + $0xc0] sm:$0xff]
    %v58 = vld [vmem:[%s0 + $0xc8] sm:$0xff]
    %v59 = vld [vmem:[%s0 + $0xd0] sm:$0xff]
    %v60 = vld [vmem:[%s0 + $0xd8] sm:$0xff]
    %v61 = vld [vmem:[%s0 + $0xe0] sm:$0xff]
    %v62 = vld [vmem:[%s0 + $0xe8] sm:$0xff]
    %v63 = vld [vmem:[%s0 + $0xf0] sm:$0xff]
    %v64 = vld [vmem:[%s0 + $0xf8] sm:$0xff]
    %v65 = vld [vmem:[%s1] sm:$0xf]
    %vm66 = vcmask 31744
    %v68 = vsel %vm66, %v33, 0
    %v71 = vsel %vm66, %v34, 0
    %v74 = vsel %vm66, %v35, 0
    %v77 = vsel %vm66, %v36, 0
    %v80 = vsel %vm66, %v37, 0
    %v83 = vsel %vm66, %v38, 0
    %v86 = vsel %vm66, %v39, 0
    %v89 = vsel %vm66, %v40, 0
    %v92 = vsel %vm66, %v41, 0
    %v95 = vsel %vm66, %v42, 0
    %v98 = vsel %vm66, %v43, 0
    %v101 = vsel %vm66, %v44, 0
    %v104 = vsel %vm66, %v45, 0
    %v107 = vsel %vm66, %v46, 0
    %v110 = vsel %vm66, %v47, 0
    %v113 = vsel %vm66, %v48, 0
    %v116 = vsel %vm66, %v49, 0
    %v119 = vsel %vm66, %v50, 0
    %v122 = vsel %vm66, %v51, 0
    %v125 = vsel %vm66, %v52, 0
    %v128 = vsel %vm66, %v53, 0
    %v131 = vsel %vm66, %v54, 0
    %v134 = vsel %vm66, %v55, 0
    %v137 = vsel %vm66, %v56, 0
    %v140 = vsel %vm66, %v57, 0
    %v143 = vsel %vm66, %v58, 0
    %v146 = vsel %vm66, %v59, 0
    %v149 = vsel %vm66, %v60, 0
    %v152 = vsel %vm66, %v61, 0
    %v155 = vsel %vm66, %v62, 0
    %v158 = vsel %vm66, %v63, 0
    %v161 = vsel %vm66, %v64, 0
    %vm163 = vcmask 1043456
    %v165 = vsel %vm163, %v65, 0
    %167 = vmatprep.subr.mxu0 0.0
    %168 = vmatpush1.msra.mxu0 %v165
    %169 = vmatprep.subr.mxu0 0.0
    %170 = vmatpush1.msra.mxu0 0.0
    %171 = vmatprep.subr.mxu0 0.0
    %172 = vmatpush1.msra.mxu0 0.0
    %173 = vmatprep.subr.mxu0 0.0
    %174 = vmatpush1.msra.mxu0 0.0
    %175 = vmatprep.subr.mxu0 0.0
    %176 = vmatpush1.msra.mxu0 0.0
    %177 = vmatprep.subr.mxu0 0.0
    %178 = vmatpush1.msra.mxu0 0.0
    %179 = vmatprep.subr.mxu0 0.0
    %180 = vmatpush1.msra.mxu0 0.0
    %181 = vmatprep.subr.mxu0 0.0
    %182 = vmatpush1.msra.mxu0 0.0
    %183 = vmatprep.subr.mxu0 0.0
    %184 = vmatpush1.msra.mxu0 0.0
    %185 = vmatprep.subr.mxu0 0.0
    %186 = vmatpush1.msra.mxu0 0.0
    %187 = vmatprep.subr.mxu0 0.0
    %188 = vmatpush1.msra.mxu0 0.0
    %189 = vmatprep.subr.mxu0 0.0
    %190 = vmatpush1.msra.mxu0 0.0
    %191 = vmatprep.subr.mxu0 0.0
    %192 = vmatpush1.msra.mxu0 0.0
    %193 = vmatprep.subr.mxu0 0.0
    %194 = vmatpush1.msra.mxu0 0.0
    %195 = vmatprep.subr.mxu0 0.0
    %196 = vmatpush1.msra.mxu0 0.0
    %197 = vmatprep.subr.mxu0 0.0
    %198 = vmatpush1.msra.mxu0 0.0
    %199 = vmatprep.subr.mxu0 0.0
    %200 = vmatpush1.msra.mxu0 0.0
    %201 = vmatprep.subr.mxu0 0.0
    %202 = vmatpush1.msra.mxu0 0.0
    %203 = vmatprep.subr.mxu0 0.0
    %204 = vmatpush1.msra.mxu0 0.0
    %205 = vmatprep.subr.mxu0 0.0
    %206 = vmatpush1.msra.mxu0 0.0
    %207 = vmatprep.subr.mxu0 0.0
    %208 = vmatpush1.msra.mxu0 0.0
    %209 = vmatprep.subr.mxu0 0.0
    %210 = vmatpush1.msra.mxu0 0.0
    %211 = vmatprep.subr.mxu0 0.0
    %212 = vmatpush1.msra.mxu0 0.0
    %213 = vmatprep.subr.mxu0 0.0
    %214 = vmatpush1.msra.mxu0 0.0
    %215 = vmatprep.subr.mxu0 0.0
    %216 = vmatpush1.msra.mxu0 0.0
    %217 = vmatprep.subr.mxu0 0.0
    %218 = vmatpush1.msra.mxu0 0.0
    %219 = vmatprep.subr.mxu0 0.0
    %220 = vmatpush1.msra.mxu0 0.0
    %221 = vmatprep.subr.mxu0 0.0
    %222 = vmatpush1.msra.mxu0 0.0
    %223 = vmatprep.subr.mxu0 0.0
    %224 = vmatpush1.msra.mxu0 0.0
    %225 = vmatprep.subr.mxu0 0.0
    %226 = vmatpush1.msra.mxu0 0.0
    %227 = vmatprep.subr.mxu0 0.0
    %228 = vmatpush1.msra.mxu0 0.0
    %229 = vmatprep.subr.mxu0 0.0
    %230 = vmatpush1.msra.mxu0 0.0
    %231 = vmatprep.mubr.f32.mxu0 0.0
    %232 = vmatmul.mubr.f32.gmra.mrb[0].mxu0 %v68
    %v233 = vpop.f32.mrb[0].mxu0
    %v234 = vadd.f32 0.0, %v233
    %v235 = vpop.f32.mrb[0].mxu0
    %236 = vmatprep.mubr.f32.mxu0 0.0
    %237 = vmatmul.mubr.f32.gmra.mrb[0].mxu0 %v71
    %v238 = vpop.f32.mrb[0].mxu0
    %v239 = vadd.f32 0.0, %v238
    %v240 = vpop.f32.mrb[0].mxu0
    %241 = vmatprep.mubr.f32.mxu0 0.0
    %242 = vmatmul.mubr.f32.gmra.mrb[0].mxu0 %v74
    %v243 = vpop.f32.mrb[0].mxu0
    %v244 = vadd.f32 0.0, %v243
    %v245 = vpop.f32.mrb[0].mxu0
    %246 = vmatprep.mubr.f32.mxu0 0.0
    %247 = vmatmul.mubr.f32.gmra.mrb[0].mxu0 %v77
    %v248 = vpop.f32.mrb[0].mxu0
    %v249 = vadd.f32 0.0, %v248
    %v250 = vpop.f32.mrb[0].mxu0
    %251 = vmatprep.mubr.f32.mxu0 0.0
    %252 = vmatmul.mubr.f32.gmra.mrb[0].mxu0 %v80
    %v253 = vpop.f32.mrb[0].mxu0
    %v254 = vadd.f32 0.0, %v253
    %v255 = vpop.f32.mrb[0].mxu0
    %256 = vmatprep.mubr.f32.mxu0 0.0
    %257 = vmatmul.mubr.f32.gmra.mrb[0].mxu0 %v83
    %v258 = vpop.f32.mrb[0].mxu0
    %v259 = vadd.f32 0.0, %v258
    %v260 = vpop.f32.mrb[0].mxu0
    %261 = vmatprep.mubr.f32.mxu0 0.0
    %262 = vmatmul.mubr.f32.gmra.mrb[0].mxu0 %v86
    %v263 = vpop.f32.mrb[0].mxu0
    %v264 = vadd.f32 0.0, %v263
    %v265 = vpop.f32.mrb[0].mxu0
    %266 = vmatprep.mubr.f32.mxu0 0.0
    %267 = vmatmul.mubr.f32.gmra.mrb[0].mxu0 %v89
    %v268 = vpop.f32.mrb[0].mxu0
    %v269 = vadd.f32 0.0, %v268
    %v270 = vpop.f32.mrb[0].mxu0
    %271 = vmatprep.mubr.f32.mxu0 0.0
    %272 = vmatmul.mubr.f32.gmra.mrb[0].mxu0 %v92
    %v273 = vpop.f32.mrb[0].mxu0
    %v274 = vadd.f32 0.0, %v273
    %v275 = vpop.f32.mrb[0].mxu0
    %276 = vmatprep.mubr.f32.mxu0 0.0
    %277 = vmatmul.mubr.f32.gmra.mrb[0].mxu0 %v95
    %v278 = vpop.f32.mrb[0].mxu0
    %v279 = vadd.f32 0.0, %v278
    %v280 = vpop.f32.mrb[0].mxu0
    %281 = vmatprep.mubr.f32.mxu0 0.0
    %282 = vmatmul.mubr.f32.gmra.mrb[0].mxu0 %v98
    %v283 = vpop.f32.mrb[0].mxu0
    %v284 = vadd.f32 0.0, %v283
    %v285 = vpop.f32.mrb[0].mxu0
    %286 = vmatprep.mubr.f32.mxu0 0.0
    %287 = vmatmul.mubr.f32.gmra.mrb[0].mxu0 %v101
    %v288 = vpop.f32.mrb[0].mxu0
    %v289 = vadd.f32 0.0, %v288
    %v290 = vpop.f32.mrb[0].mxu0
    %291 = vmatprep.mubr.f32.mxu0 0.0
    %292 = vmatmul.mubr.f32.gmra.mrb[0].mxu0 %v104
    %v293 = vpop.f32.mrb[0].mxu0
    %v294 = vadd.f32 0.0, %v293
    %v295 = vpop.f32.mrb[0].mxu0
    %296 = vmatprep.mubr.f32.mxu0 0.0
    %297 = vmatmul.mubr.f32.gmra.mrb[0].mxu0 %v107
    %v298 = vpop.f32.mrb[0].mxu0
    %v299 = vadd.f32 0.0, %v298
    %v300 = vpop.f32.mrb[0].mxu0
    %301 = vmatprep.mubr.f32.mxu0 0.0
    %302 = vmatmul.mubr.f32.gmra.mrb[0].mxu0 %v110
    %v303 = vpop.f32.mrb[0].mxu0
    %v304 = vadd.f32 0.0, %v303
    %v305 = vpop.f32.mrb[0].mxu0
    %306 = vmatprep.mubr.f32.mxu0 0.0
    %307 = vmatmul.mubr.f32.gmra.mrb[0].mxu0 %v113
    %v308 = vpop.f32.mrb[0].mxu0
    %v309 = vadd.f32 0.0, %v308
    %v310 = vpop.f32.mrb[0].mxu0
    %311 = vmatprep.mubr.f32.mxu0 0.0
    %312 = vmatmul.mubr.f32.gmra.mrb[0].mxu0 %v116
    %v313 = vpop.f32.mrb[0].mxu0
    %v314 = vadd.f32 0.0, %v313
    %v315 = vpop.f32.mrb[0].mxu0
    %316 = vmatprep.mubr.f32.mxu0 0.0
    %317 = vmatmul.mubr.f32.gmra.mrb[0].mxu0 %v119
    %v318 = vpop.f32.mrb[0].mxu0
    %v319 = vadd.f32 0.0, %v318
    %v320 = vpop.f32.mrb[0].mxu0
    %321 = vmatprep.mubr.f32.mxu0 0.0
    %322 = vmatmul.mubr.f32.gmra.mrb[0].mxu0 %v122
    %v323 = vpop.f32.mrb[0].mxu0
    %v324 = vadd.f32 0.0, %v323
    %v325 = vpop.f32.mrb[0].mxu0
    %326 = vmatprep.mubr.f32.mxu0 0.0
    %327 = vmatmul.mubr.f32.gmra.mrb[0].mxu0 %v125
    %v328 = vpop.f32.mrb[0].mxu0
    %v329 = vadd.f32 0.0, %v328
    %v330 = vpop.f32.mrb[0].mxu0
    %331 = vmatprep.mubr.f32.mxu0 0.0
    %332 = vmatmul.mubr.f32.gmra.mrb[0].mxu0 %v128
    %v333 = vpop.f32.mrb[0].mxu0
    %v334 = vadd.f32 0.0, %v333
    %v335 = vpop.f32.mrb[0].mxu0
    %336 = vmatprep.mubr.f32.mxu0 0.0
    %337 = vmatmul.mubr.f32.gmra.mrb[0].mxu0 %v131
    %v338 = vpop.f32.mrb[0].mxu0
    %v339 = vadd.f32 0.0, %v338
    %v340 = vpop.f32.mrb[0].mxu0
    %341 = vmatprep.mubr.f32.mxu0 0.0
    %342 = vmatmul.mubr.f32.gmra.mrb[0].mxu0 %v134
    %v343 = vpop.f32.mrb[0].mxu0
    %v344 = vadd.f32 0.0, %v343
    %v345 = vpop.f32.mrb[0].mxu0
    %346 = vmatprep.mubr.f32.mxu0 0.0
    %347 = vmatmul.mubr.f32.gmra.mrb[0].mxu0 %v137
    %v348 = vpop.f32.mrb[0].mxu0
    %v349 = vadd.f32 0.0, %v348
    %v350 = vpop.f32.mrb[0].mxu0
    %351 = vmatprep.mubr.f32.mxu0 0.0
    %352 = vmatmul.mubr.f32.gmra.mrb[0].mxu0 %v140
    %v353 = vpop.f32.mrb[0].mxu0
    %v354 = vadd.f32 0.0, %v353
    %v355 = vpop.f32.mrb[0].mxu0
    %356 = vmatprep.mubr.f32.mxu0 0.0
    %357 = vmatmul.mubr.f32.gmra.mrb[0].mxu0 %v143
    %v358 = vpop.f32.mrb[0].mxu0
    %v359 = vadd.f32 0.0, %v358
    %v360 = vpop.f32.mrb[0].mxu0
    %361 = vmatprep.mubr.f32.mxu0 0.0
    %362 = vmatmul.mubr.f32.gmra.mrb[0].mxu0 %v146
    %v363 = vpop.f32.mrb[0].mxu0
    %v364 = vadd.f32 0.0, %v363
    %v365 = vpop.f32.mrb[0].mxu0
    %366 = vmatprep.mubr.f32.mxu0 0.0
    %367 = vmatmul.mubr.f32.gmra.mrb[0].mxu0 %v149
    %v368 = vpop.f32.mrb[0].mxu0
    %v369 = vadd.f32 0.0, %v368
    %v370 = vpop.f32.mrb[0].mxu0
    %371 = vmatprep.mubr.f32.mxu0 0.0
    %372 = vmatmul.mubr.f32.gmra.mrb[0].mxu0 %v152
    %v373 = vpop.f32.mrb[0].mxu0
    %v374 = vadd.f32 0.0, %v373
    %v375 = vpop.f32.mrb[0].mxu0
    %376 = vmatprep.mubr.f32.mxu0 0.0
    %377 = vmatmul.mubr.f32.gmra.mrb[0].mxu0 %v155
    %v378 = vpop.f32.mrb[0].mxu0
    %v379 = vadd.f32 0.0, %v378
    %v380 = vpop.f32.mrb[0].mxu0
    %381 = vmatprep.mubr.f32.mxu0 0.0
    %382 = vmatmul.mubr.f32.gmra.mrb[0].mxu0 %v158
    %v383 = vpop.f32.mrb[0].mxu0
    %v384 = vadd.f32 0.0, %v383
    %v385 = vpop.f32.mrb[0].mxu0
    %386 = vmatprep.mubr.f32.mxu0 0.0
    %387 = vmatmul.mubr.f32.gmra.mrb[0].mxu0 %v161
    %v388 = vpop.f32.mrb[0].mxu0
    %v389 = vadd.f32 0.0, %v388
    %v390 = vpop.f32.mrb[0].mxu0
    %391 = vdwg.mxu0
    %v392 = vlaneseq
    %v393 = vshrl.u32 %v392, 7
    %v394 = vadd.s32 %v393, 8
    %v395 = vadd.s32 %v393, 16
    %v396 = vadd.s32 %v393, 24
    %v397 = vadd.s32 %v393, 32
    %v398 = vadd.s32 %v393, 40
    %v399 = vadd.s32 %v393, 48
    %v400 = vadd.s32 %v393, 56
    %v401 = vadd.s32 %v393, 64
    %v402 = vadd.s32 %v393, 72
    %v403 = vadd.s32 %v393, 80
    %v404 = vadd.s32 %v393, 88
    %v405 = vadd.s32 %v393, 96
    %v406 = vadd.s32 %v393, 104
    %v407 = vadd.s32 %v393, 112
    %v408 = vadd.s32 %v393, 120
    %v409 = vadd.s32 %v393, 128
    %v410 = vadd.s32 %v393, 136
    %v411 = vadd.s32 %v393, 144
    %v412 = vadd.s32 %v393, 152
    %v413 = vadd.s32 %v393, 160
    %v414 = vadd.s32 %v393, 168
    %v415 = vadd.s32 %v393, 176
    %v416 = vadd.s32 %v393, 184
    %v417 = vadd.s32 %v393, 192
    %v418 = vadd.s32 %v393, 200
    %v419 = vadd.s32 %v393, 208
    %v420 = vadd.s32 %v393, 216
    %v421 = vadd.s32 %v393, 224
    %v422 = vadd.s32 %v393, 232
    %v423 = vadd.s32 %v393, 240
    %v424 = vadd.s32 %v393, 248
    %v425 = vld [vmem:[%s2] sm:$0x1]
    %v427 = vlaneseq
    %v428 = vshrl.u32 %v427, 7
    %v429 = vsub.s32 0, %v428
    %v430 = vrot.slane %v425, %v429
    %431 = vrot.lane.b32.xlu0 %v430, 8
    %v432 = vpop.permute.xlu0 %431
    %v434 = vadd.f32 %v234, %v432
    %v435 = vadd.f32 %v239, %v432
    %v436 = vadd.f32 %v244, %v432
    %v437 = vadd.f32 %v249, %v432
    %v438 = vadd.f32 %v254, %v432
    %v439 = vadd.f32 %v259, %v432
    %v440 = vadd.f32 %v264, %v432
    %v441 = vadd.f32 %v269, %v432
    %v442 = vadd.f32 %v274, %v432
    %v443 = vadd.f32 %v279, %v432
    %v444 = vadd.f32 %v284, %v432
    %v445 = vadd.f32 %v289, %v432
    %v446 = vadd.f32 %v294, %v432
    %v447 = vadd.f32 %v299, %v432
    %v448 = vadd.f32 %v304, %v432
    %v449 = vadd.f32 %v309, %v432
    %v450 = vadd.f32 %v314, %v432
    %v451 = vadd.f32 %v319, %v432
    %v452 = vadd.f32 %v324, %v432
    %v453 = vadd.f32 %v329, %v432
    %v454 = vadd.f32 %v334, %v432
    %v455 = vadd.f32 %v339, %v432
    %v456 = vadd.f32 %v344, %v432
    %v457 = vadd.f32 %v349, %v432
    %v458 = vadd.f32 %v354, %v432
    %v459 = vadd.f32 %v359, %v432
    %v460 = vadd.f32 %v364, %v432
    %v461 = vadd.f32 %v369, %v432
    %v462 = vadd.f32 %v374, %v432
    %v463 = vadd.f32 %v379, %v432
    %v464 = vadd.f32 %v384, %v432
    %v465 = vadd.f32 %v389, %v432
    %v466 = vrot.slane %v234, 7
    %v467 = vrot.slane %v239, 7
    %v468 = vrot.slane %v244, 7
    %v469 = vrot.slane %v249, 7
    %v470 = vrot.slane %v254, 7
    %v471 = vrot.slane %v259, 7
    %v472 = vrot.slane %v264, 7
    %v473 = vrot.slane %v269, 7
    %v474 = vrot.slane %v274, 7
    %v475 = vrot.slane %v279, 7
    %v476 = vrot.slane %v284, 7
    %v477 = vrot.slane %v289, 7
    %v478 = vrot.slane %v294, 7
    %v479 = vrot.slane %v299, 7
    %v480 = vrot.slane %v304, 7
    %v481 = vrot.slane %v309, 7
    %v482 = vrot.slane %v314, 7
    %v483 = vrot.slane %v319, 7
    %v484 = vrot.slane %v324, 7
    %v485 = vrot.slane %v329, 7
    %v486 = vrot.slane %v334, 7
    %v487 = vrot.slane %v339, 7
    %v488 = vrot.slane %v344, 7
    %v489 = vrot.slane %v349, 7
    %v490 = vrot.slane %v354, 7
    %v491 = vrot.slane %v359, 7
    %v492 = vrot.slane %v364, 7
    %v493 = vrot.slane %v369, 7
    %v494 = vrot.slane %v374, 7
    %v495 = vrot.slane %v379, 7
    %v496 = vrot.slane %v384, 7
    %v497 = vrot.slane %v389, 7
    %vm498 = vcmp.lt.s32.totalorder %v393, 1
    %v499 = vsel %vm498, %v496, %v497
    %v500 = vsel %vm498, %v495, %v496
    %v501 = vsel %vm498, %v494, %v495
    %v502 = vsel %vm498, %v493, %v494
    %v503 = vsel %vm498, %v492, %v493
    %v504 = vsel %vm498, %v491, %v492
    %v505 = vsel %vm498, %v490, %v491
    %v506 = vsel %vm498, %v489, %v490
    %v507 = vsel %vm498, %v488, %v489
    %v508 = vsel %vm498, %v487, %v488
    %v509 = vsel %vm498, %v486, %v487
    %v510 = vsel %vm498, %v485, %v486
    %v511 = vsel %vm498, %v484, %v485
    %v512 = vsel %vm498, %v483, %v484
    %v513 = vsel %vm498, %v482, %v483
    %v514 = vsel %vm498, %v481, %v482
    %v515 = vsel %vm498, %v480, %v481
    %v516 = vsel %vm498, %v479, %v480
    %v517 = vsel %vm498, %v478, %v479
    %v518 = vsel %vm498, %v477, %v478
    %v519 = vsel %vm498, %v476, %v477
    %v520 = vsel %vm498, %v475, %v476
    %v521 = vsel %vm498, %v474, %v475
    %v522 = vsel %vm498, %v473, %v474
    %v523 = vsel %vm498, %v472, %v473
    %v524 = vsel %vm498, %v471, %v472
    %v525 = vsel %vm498, %v470, %v471
    %v526 = vsel %vm498, %v469, %v470
    %v527 = vsel %vm498, %v468, %v469
    %v528 = vsel %vm498, %v467, %v468
    %v529 = vsel %vm498, %v466, %v467
    %v530 = vsel %vm498, %v497, %v466
    %vm531 = vcmp.eq.s32.totalorder %v393, 0
    %vm532 = vcmp.eq.s32.totalorder %v394, 0
    %vm533 = vcmp.eq.s32.totalorder %v395, 0
    %vm534 = vcmp.eq.s32.totalorder %v396, 0
    %vm535 = vcmp.eq.s32.totalorder %v397, 0
    %vm536 = vcmp.eq.s32.totalorder %v398, 0
    %vm537 = vcmp.eq.s32.totalorder %v399, 0
    %vm538 = vcmp.eq.s32.totalorder %v400, 0
    %vm539 = vcmp.eq.s32.totalorder %v401, 0
    %vm540 = vcmp.eq.s32.totalorder %v402, 0
    %vm541 = vcmp.eq.s32.totalorder %v403, 0
    %vm542 = vcmp.eq.s32.totalorder %v404, 0
    %vm543 = vcmp.eq.s32.totalorder %v405, 0
    %vm544 = vcmp.eq.s32.totalorder %v406, 0
    %vm545 = vcmp.eq.s32.totalorder %v407, 0
    %vm546 = vcmp.eq.s32.totalorder %v408, 0
    %vm547 = vcmp.eq.s32.totalorder %v409, 0
    %vm548 = vcmp.eq.s32.totalorder %v410, 0
    %vm549 = vcmp.eq.s32.totalorder %v411, 0
    %vm550 = vcmp.eq.s32.totalorder %v412, 0
    %vm551 = vcmp.eq.s32.totalorder %v413, 0
    %vm552 = vcmp.eq.s32.totalorder %v414, 0
    %vm553 = vcmp.eq.s32.totalorder %v415, 0
    %vm554 = vcmp.eq.s32.totalorder %v416, 0
    %vm555 = vcmp.eq.s32.totalorder %v417, 0
    %vm556 = vcmp.eq.s32.totalorder %v418, 0
    %vm557 = vcmp.eq.s32.totalorder %v419, 0
    %vm558 = vcmp.eq.s32.totalorder %v420, 0
    %vm559 = vcmp.eq.s32.totalorder %v421, 0
    %vm560 = vcmp.eq.s32.totalorder %v422, 0
    %vm561 = vcmp.eq.s32.totalorder %v423, 0
    %vm562 = vcmp.eq.s32.totalorder %v424, 0
    %v563 = vsel %vm531, 1, 0
    %v564 = vsel %vm532, 1, 0
    %v565 = vsel %vm533, 1, 0
    %v566 = vsel %vm534, 1, 0
    %v567 = vsel %vm535, 1, 0
    %v568 = vsel %vm536, 1, 0
    %v569 = vsel %vm537, 1, 0
    %v570 = vsel %vm538, 1, 0
    %v571 = vsel %vm539, 1, 0
    %v572 = vsel %vm540, 1, 0
    %v573 = vsel %vm541, 1, 0
    %v574 = vsel %vm542, 1, 0
    %v575 = vsel %vm543, 1, 0
    %v576 = vsel %vm544, 1, 0
    %v577 = vsel %vm545, 1, 0
    %v578 = vsel %vm546, 1, 0
    %v579 = vsel %vm547, 1, 0
    %v580 = vsel %vm548, 1, 0
    %v581 = vsel %vm549, 1, 0
    %v582 = vsel %vm550, 1, 0
    %v583 = vsel %vm551, 1, 0
    %v584 = vsel %vm552, 1, 0
    %v585 = vsel %vm553, 1, 0
    %v586 = vsel %vm554, 1, 0
    %v587 = vsel %vm555, 1, 0
    %v588 = vsel %vm556, 1, 0
    %v589 = vsel %vm557, 1, 0
    %v590 = vsel %vm558, 1, 0
    %v591 = vsel %vm559, 1, 0
    %v592 = vsel %vm560, 1, 0
    %v593 = vsel %vm561, 1, 0
    %v594 = vsel %vm562, 1, 0
    %vm595 = vcmp.eq.s32.totalorder %v563, 1
    %vm596 = vcmp.eq.s32.totalorder %v564, 1
    %vm597 = vcmp.eq.s32.totalorder %v565, 1
    %vm598 = vcmp.eq.s32.totalorder %v566, 1
    %vm599 = vcmp.eq.s32.totalorder %v567, 1
    %vm600 = vcmp.eq.s32.totalorder %v568, 1
    %vm601 = vcmp.eq.s32.totalorder %v569, 1
    %vm602 = vcmp.eq.s32.totalorder %v570, 1
    %vm603 = vcmp.eq.s32.totalorder %v571, 1
    %vm604 = vcmp.eq.s32.totalorder %v572, 1
    %vm605 = vcmp.eq.s32.totalorder %v573, 1
    %vm606 = vcmp.eq.s32.totalorder %v574, 1
    %vm607 = vcmp.eq.s32.totalorder %v575, 1
    %vm608 = vcmp.eq.s32.totalorder %v576, 1
    %vm609 = vcmp.eq.s32.totalorder %v577, 1
    %vm610 = vcmp.eq.s32.totalorder %v578, 1
    %vm611 = vcmp.eq.s32.totalorder %v579, 1
    %vm612 = vcmp.eq.s32.totalorder %v580, 1
    %vm613 = vcmp.eq.s32.totalorder %v581, 1
    %vm614 = vcmp.eq.s32.totalorder %v582, 1
    %vm615 = vcmp.eq.s32.totalorder %v583, 1
    %vm616 = vcmp.eq.s32.totalorder %v584, 1
    %vm617 = vcmp.eq.s32.totalorder %v585, 1
    %vm618 = vcmp.eq.s32.totalorder %v586, 1
    %vm619 = vcmp.eq.s32.totalorder %v587, 1
    %vm620 = vcmp.eq.s32.totalorder %v588, 1
    %vm621 = vcmp.eq.s32.totalorder %v589, 1
    %vm622 = vcmp.eq.s32.totalorder %v590, 1
    %vm623 = vcmp.eq.s32.totalorder %v591, 1
    %vm624 = vcmp.eq.s32.totalorder %v592, 1
    %vm625 = vcmp.eq.s32.totalorder %v593, 1
    %vm626 = vcmp.eq.s32.totalorder %v594, 1
    %v627 = vsel %vm595, 0.0, %v530
    %v628 = vsel %vm596, 0.0, %v529
    %v629 = vsel %vm597, 0.0, %v528
    %v630 = vsel %vm598, 0.0, %v527
    %v631 = vsel %vm599, 0.0, %v526
    %v632 = vsel %vm600, 0.0, %v525
    %v633 = vsel %vm601, 0.0, %v524
    %v634 = vsel %vm602, 0.0, %v523
    %v635 = vsel %vm603, 0.0, %v522
    %v636 = vsel %vm604, 0.0, %v521
    %v637 = vsel %vm605, 0.0, %v520
    %v638 = vsel %vm606, 0.0, %v519
    %v639 = vsel %vm607, 0.0, %v518
    %v640 = vsel %vm608, 0.0, %v517
    %v641 = vsel %vm609, 0.0, %v516
    %v642 = vsel %vm610, 0.0, %v515
    %v643 = vsel %vm611, 0.0, %v514
    %v644 = vsel %vm612, 0.0, %v513
    %v645 = vsel %vm613, 0.0, %v512
    %v646 = vsel %vm614, 0.0, %v511
    %v647 = vsel %vm615, 0.0, %v510
    %v648 = vsel %vm616, 0.0, %v509
    %v649 = vsel %vm617, 0.0, %v508
    %v650 = vsel %vm618, 0.0, %v507
    %v651 = vsel %vm619, 0.0, %v506
    %v652 = vsel %vm620, 0.0, %v505
    %v653 = vsel %vm621, 0.0, %v504
    %v654 = vsel %vm622, 0.0, %v503
    %v655 = vsel %vm623, 0.0, %v502
    %v656 = vsel %vm624, 0.0, %v501
    %v657 = vsel %vm625, 0.0, %v500
    %v658 = vsel %vm626, 0.0, %v499
    %691 = vrot.lane.b32.xlu0 %v627, 8
    %v692 = vpop.permute.xlu0 %691
    %693 = vrot.lane.b32.xlu0 %v628, 8
    %v694 = vpop.permute.xlu0 %693
    %695 = vrot.lane.b32.xlu0 %v629, 8
    %v696 = vpop.permute.xlu0 %695
    %697 = vrot.lane.b32.xlu0 %v630, 8
    %v698 = vpop.permute.xlu0 %697
    %699 = vrot.lane.b32.xlu0 %v631, 8
    %v700 = vpop.permute.xlu0 %699
    %701 = vrot.lane.b32.xlu0 %v632, 8
    %v702 = vpop.permute.xlu0 %701
    %703 = vrot.lane.b32.xlu0 %v633, 8
    %v704 = vpop.permute.xlu0 %703
    %705 = vrot.lane.b32.xlu0 %v634, 8
    %v706 = vpop.permute.xlu0 %705
    %707 = vrot.lane.b32.xlu0 %v635, 8
    %v708 = vpop.permute.xlu0 %707
    %709 = vrot.lane.b32.xlu0 %v636, 8
    %v710 = vpop.permute.xlu0 %709
    %711 = vrot.lane.b32.xlu0 %v637, 8
    %v712 = vpop.permute.xlu0 %711
    %713 = vrot.lane.b32.xlu0 %v638, 8
    %v714 = vpop.permute.xlu0 %713
    %715 = vrot.lane.b32.xlu0 %v639, 8
    %v716 = vpop.permute.xlu0 %715
    %717 = vrot.lane.b32.xlu0 %v640, 8
    %v718 = vpop.permute.xlu0 %717
    %719 = vrot.lane.b32.xlu0 %v641, 8
    %v720 = vpop.permute.xlu0 %719
    %721 = vrot.lane.b32.xlu0 %v642, 8
    %v722 = vpop.permute.xlu0 %721
    %723 = vrot.lane.b32.xlu0 %v643, 8
    %v724 = vpop.permute.xlu0 %723
    %725 = vrot.lane.b32.xlu0 %v644, 8
    %v726 = vpop.permute.xlu0 %725
    %727 = vrot.lane.b32.xlu0 %v645, 8
    %v728 = vpop.permute.xlu0 %727
    %729 = vrot.lane.b32.xlu0 %v646, 8
    %v730 = vpop.permute.xlu0 %729
    %731 = vrot.lane.b32.xlu0 %v647, 8
    %v732 = vpop.permute.xlu0 %731
    %733 = vrot.lane.b32.xlu0 %v648, 8
    %v734 = vpop.permute.xlu0 %733
    %735 = vrot.lane.b32.xlu0 %v649, 8
    %v736 = vpop.permute.xlu0 %735
    %737 = vrot.lane.b32.xlu0 %v650, 8
    %v738 = vpop.permute.xlu0 %737
    %739 = vrot.lane.b32.xlu0 %v651, 8
    %v740 = vpop.permute.xlu0 %739
    %741 = vrot.lane.b32.xlu0 %v652, 8
    %v742 = vpop.permute.xlu0 %741
    %743 = vrot.lane.b32.xlu0 %v653, 8
    %v744 = vpop.permute.xlu0 %743
    %745 = vrot.lane.b32.xlu0 %v654, 8
    %v746 = vpop.permute.xlu0 %745
    %747 = vrot.lane.b32.xlu0 %v655, 8
    %v748 = vpop.permute.xlu0 %747
    %749 = vrot.lane.b32.xlu0 %v656, 8
    %v750 = vpop.permute.xlu0 %749
    %751 = vrot.lane.b32.xlu0 %v657, 8
    %v752 = vpop.permute.xlu0 %751
    %753 = vrot.lane.b32.xlu0 %v658, 8
    %v754 = vpop.permute.xlu0 %753
    %v787 = vadd.f32 %v434, %v692
    %v788 = vadd.f32 %v435, %v694
    %v789 = vadd.f32 %v436, %v696
    %v790 = vadd.f32 %v437, %v698
    %v791 = vadd.f32 %v438, %v700
    %v792 = vadd.f32 %v439, %v702
    %v793 = vadd.f32 %v440, %v704
    %v794 = vadd.f32 %v441, %v706
    %v795 = vadd.f32 %v442, %v708
    %v796 = vadd.f32 %v443, %v710
    %v797 = vadd.f32 %v444, %v712
    %v798 = vadd.f32 %v445, %v714
    %v799 = vadd.f32 %v446, %v716
    %v800 = vadd.f32 %v447, %v718
    %v801 = vadd.f32 %v448, %v720
    %v802 = vadd.f32 %v449, %v722
    %v803 = vadd.f32 %v450, %v724
    %v804 = vadd.f32 %v451, %v726
    %v805 = vadd.f32 %v452, %v728
    %v806 = vadd.f32 %v453, %v730
    %v807 = vadd.f32 %v454, %v732
    %v808 = vadd.f32 %v455, %v734
    %v809 = vadd.f32 %v456, %v736
    %v810 = vadd.f32 %v457, %v738
    %v811 = vadd.f32 %v458, %v740
    %v812 = vadd.f32 %v459, %v742
    %v813 = vadd.f32 %v460, %v744
    %v814 = vadd.f32 %v461, %v746
    %v815 = vadd.f32 %v462, %v748
    %v816 = vadd.f32 %v463, %v750
    %v817 = vadd.f32 %v464, %v752
    %v818 = vadd.f32 %v465, %v754
    %851 = vrot.lane.b32.xlu0 %v234, 112
    %v852 = vpop.permute.xlu0 %851
    %853 = vrot.lane.b32.xlu0 %v239, 112
    %v854 = vpop.permute.xlu0 %853
    %855 = vrot.lane.b32.xlu0 %v244, 112
    %v856 = vpop.permute.xlu0 %855
    %857 = vrot.lane.b32.xlu0 %v249, 112
    %v858 = vpop.permute.xlu0 %857
    %859 = vrot.lane.b32.xlu0 %v254, 112
    %v860 = vpop.permute.xlu0 %859
    %861 = vrot.lane.b32.xlu0 %v259, 112
    %v862 = vpop.permute.xlu0 %861
    %863 = vrot.lane.b32.xlu0 %v264, 112
    %v864 = vpop.permute.xlu0 %863
    %865 = vrot.lane.b32.xlu0 %v269, 112
    %v866 = vpop.permute.xlu0 %865
    %867 = vrot.lane.b32.xlu0 %v274, 112
    %v868 = vpop.permute.xlu0 %867
    %869 = vrot.lane.b32.xlu0 %v279, 112
    %v870 = vpop.permute.xlu0 %869
    %871 = vrot.lane.b32.xlu0 %v284, 112
    %v872 = vpop.permute.xlu0 %871
    %873 = vrot.lane.b32.xlu0 %v289, 112
    %v874 = vpop.permute.xlu0 %873
    %875 = vrot.lane.b32.xlu0 %v294, 112
    %v876 = vpop.permute.xlu0 %875
    %877 = vrot.lane.b32.xlu0 %v299, 112
    %v878 = vpop.permute.xlu0 %877
    %879 = vrot.lane.b32.xlu0 %v304, 112
    %v880 = vpop.permute.xlu0 %879
    %881 = vrot.lane.b32.xlu0 %v309, 112
    %v882 = vpop.permute.xlu0 %881
    %883 = vrot.lane.b32.xlu0 %v314, 112
    %v884 = vpop.permute.xlu0 %883
    %885 = vrot.lane.b32.xlu0 %v319, 112
    %v886 = vpop.permute.xlu0 %885
    %887 = vrot.lane.b32.xlu0 %v324, 112
    %v888 = vpop.permute.xlu0 %887
    %889 = vrot.lane.b32.xlu0 %v329, 112
    %v890 = vpop.permute.xlu0 %889
    %891 = vrot.lane.b32.xlu0 %v334, 112
    %v892 = vpop.permute.xlu0 %891
    %893 = vrot.lane.b32.xlu0 %v339, 112
    %v894 = vpop.permute.xlu0 %893
    %895 = vrot.lane.b32.xlu0 %v344, 112
    %v896 = vpop.permute.xlu0 %895
    %897 = vrot.lane.b32.xlu0 %v349, 112
    %v898 = vpop.permute.xlu0 %897
    %899 = vrot.lane.b32.xlu0 %v354, 112
    %v900 = vpop.permute.xlu0 %899
    %901 = vrot.lane.b32.xlu0 %v359, 112
    %v902 = vpop.permute.xlu0 %901
    %903 = vrot.lane.b32.xlu0 %v364, 112
    %v904 = vpop.permute.xlu0 %903
    %905 = vrot.lane.b32.xlu0 %v369, 112
    %v906 = vpop.permute.xlu0 %905
    %907 = vrot.lane.b32.xlu0 %v374, 112
    %v908 = vpop.permute.xlu0 %907
    %909 = vrot.lane.b32.xlu0 %v379, 112
    %v910 = vpop.permute.xlu0 %909
    %911 = vrot.lane.b32.xlu0 %v384, 112
    %v912 = vpop.permute.xlu0 %911
    %913 = vrot.lane.b32.xlu0 %v389, 112
    %v914 = vpop.permute.xlu0 %913
    %v947 = vrot.slane %v852, 1
    %v948 = vrot.slane %v854, 1
    %v949 = vrot.slane %v856, 1
    %v950 = vrot.slane %v858, 1
    %v951 = vrot.slane %v860, 1
    %v952 = vrot.slane %v862, 1
    %v953 = vrot.slane %v864, 1
    %v954 = vrot.slane %v866, 1
    %v955 = vrot.slane %v868, 1
    %v956 = vrot.slane %v870, 1
    %v957 = vrot.slane %v872, 1
    %v958 = vrot.slane %v874, 1
    %v959 = vrot.slane %v876, 1
    %v960 = vrot.slane %v878, 1
    %v961 = vrot.slane %v880, 1
    %v962 = vrot.slane %v882, 1
    %v963 = vrot.slane %v884, 1
    %v964 = vrot.slane %v886, 1
    %v965 = vrot.slane %v888, 1
    %v966 = vrot.slane %v890, 1
    %v967 = vrot.slane %v892, 1
    %v968 = vrot.slane %v894, 1
    %v969 = vrot.slane %v896, 1
    %v970 = vrot.slane %v898, 1
    %v971 = vrot.slane %v900, 1
    %v972 = vrot.slane %v902, 1
    %v973 = vrot.slane %v904, 1
    %v974 = vrot.slane %v906, 1
    %v975 = vrot.slane %v908, 1
    %v976 = vrot.slane %v910, 1
    %v977 = vrot.slane %v912, 1
    %v978 = vrot.slane %v914, 1
    %vm979 = vcmp.lt.s32.totalorder %v393, 7
    %v980 = vsel %vm979, %v977, %v978
    %v981 = vsel %vm979, %v976, %v977
    %v982 = vsel %vm979, %v975, %v976
    %v983 = vsel %vm979, %v974, %v975
    %v984 = vsel %vm979, %v973, %v974
    %v985 = vsel %vm979, %v972, %v973
    %v986 = vsel %vm979, %v971, %v972
    %v987 = vsel %vm979, %v970, %v971
    %v988 = vsel %vm979, %v969, %v970
    %v989 = vsel %vm979, %v968, %v969
    %v990 = vsel %vm979, %v967, %v968
    %v991 = vsel %vm979, %v966, %v967
    %v992 = vsel %vm979, %v965, %v966
    %v993 = vsel %vm979, %v964, %v965
    %v994 = vsel %vm979, %v963, %v964
    %v995 = vsel %vm979, %v962, %v963
    %v996 = vsel %vm979, %v961, %v962
    %v997 = vsel %vm979, %v960, %v961
    %v998 = vsel %vm979, %v959, %v960
    %v999 = vsel %vm979, %v958, %v959
    %v1000 = vsel %vm979, %v957, %v958
    %v1001 = vsel %vm979, %v956, %v957
    %v1002 = vsel %vm979, %v955, %v956
    %v1003 = vsel %vm979, %v954, %v955
    %v1004 = vsel %vm979, %v953, %v954
    %v1005 = vsel %vm979, %v952, %v953
    %v1006 = vsel %vm979, %v951, %v952
    %v1007 = vsel %vm979, %v950, %v951
    %v1008 = vsel %vm979, %v949, %v950
    %v1009 = vsel %vm979, %v948, %v949
    %v1010 = vsel %vm979, %v947, %v948
    %v1011 = vsel %vm979, %v978, %v947
    %vm1012 = vcmp.eq.s32.totalorder %v393, 255
    %vm1013 = vcmp.eq.s32.totalorder %v394, 255
    %vm1014 = vcmp.eq.s32.totalorder %v395, 255
    %vm1015 = vcmp.eq.s32.totalorder %v396, 255
    %vm1016 = vcmp.eq.s32.totalorder %v397, 255
    %vm1017 = vcmp.eq.s32.totalorder %v398, 255
    %vm1018 = vcmp.eq.s32.totalorder %v399, 255
    %vm1019 = vcmp.eq.s32.totalorder %v400, 255
    %vm1020 = vcmp.eq.s32.totalorder %v401, 255
    %vm1021 = vcmp.eq.s32.totalorder %v402, 255
    %vm1022 = vcmp.eq.s32.totalorder %v403, 255
    %vm1023 = vcmp.eq.s32.totalorder %v404, 255
    %vm1024 = vcmp.eq.s32.totalorder %v405, 255
    %vm1025 = vcmp.eq.s32.totalorder %v406, 255
    %vm1026 = vcmp.eq.s32.totalorder %v407, 255
    %vm1027 = vcmp.eq.s32.totalorder %v408, 255
    %vm1028 = vcmp.eq.s32.totalorder %v409, 255
    %vm1029 = vcmp.eq.s32.totalorder %v410, 255
    %vm1030 = vcmp.eq.s32.totalorder %v411, 255
    %vm1031 = vcmp.eq.s32.totalorder %v412, 255
    %vm1032 = vcmp.eq.s32.totalorder %v413, 255
    %vm1033 = vcmp.eq.s32.totalorder %v414, 255
    %vm1034 = vcmp.eq.s32.totalorder %v415, 255
    %vm1035 = vcmp.eq.s32.totalorder %v416, 255
    %vm1036 = vcmp.eq.s32.totalorder %v417, 255
    %vm1037 = vcmp.eq.s32.totalorder %v418, 255
    %vm1038 = vcmp.eq.s32.totalorder %v419, 255
    %vm1039 = vcmp.eq.s32.totalorder %v420, 255
    %vm1040 = vcmp.eq.s32.totalorder %v421, 255
    %vm1041 = vcmp.eq.s32.totalorder %v422, 255
    %vm1042 = vcmp.eq.s32.totalorder %v423, 255
    %vm1043 = vcmp.eq.s32.totalorder %v424, 255
    %v1044 = vsel %vm1012, 1, 0
    %v1045 = vsel %vm1013, 1, 0
    %v1046 = vsel %vm1014, 1, 0
    %v1047 = vsel %vm1015, 1, 0
    %v1048 = vsel %vm1016, 1, 0
    %v1049 = vsel %vm1017, 1, 0
    %v1050 = vsel %vm1018, 1, 0
    %v1051 = vsel %vm1019, 1, 0
    %v1052 = vsel %vm1020, 1, 0
    %v1053 = vsel %vm1021, 1, 0
    %v1054 = vsel %vm1022, 1, 0
    %v1055 = vsel %vm1023, 1, 0
    %v1056 = vsel %vm1024, 1, 0
    %v1057 = vsel %vm1025, 1, 0
    %v1058 = vsel %vm1026, 1, 0
    %v1059 = vsel %vm1027, 1, 0
    %v1060 = vsel %vm1028, 1, 0
    %v1061 = vsel %vm1029, 1, 0
    %v1062 = vsel %vm1030, 1, 0
    %v1063 = vsel %vm1031, 1, 0
    %v1064 = vsel %vm1032, 1, 0
    %v1065 = vsel %vm1033, 1, 0
    %v1066 = vsel %vm1034, 1, 0
    %v1067 = vsel %vm1035, 1, 0
    %v1068 = vsel %vm1036, 1, 0
    %v1069 = vsel %vm1037, 1, 0
    %v1070 = vsel %vm1038, 1, 0
    %v1071 = vsel %vm1039, 1, 0
    %v1072 = vsel %vm1040, 1, 0
    %v1073 = vsel %vm1041, 1, 0
    %v1074 = vsel %vm1042, 1, 0
    %v1075 = vsel %vm1043, 1, 0
    %vm1076 = vcmp.eq.s32.totalorder %v1044, 1
    %vm1077 = vcmp.eq.s32.totalorder %v1045, 1
    %vm1078 = vcmp.eq.s32.totalorder %v1046, 1
    %vm1079 = vcmp.eq.s32.totalorder %v1047, 1
    %vm1080 = vcmp.eq.s32.totalorder %v1048, 1
    %vm1081 = vcmp.eq.s32.totalorder %v1049, 1
    %vm1082 = vcmp.eq.s32.totalorder %v1050, 1
    %vm1083 = vcmp.eq.s32.totalorder %v1051, 1
    %vm1084 = vcmp.eq.s32.totalorder %v1052, 1
    %vm1085 = vcmp.eq.s32.totalorder %v1053, 1
    %vm1086 = vcmp.eq.s32.totalorder %v1054, 1
    %vm1087 = vcmp.eq.s32.totalorder %v1055, 1
    %vm1088 = vcmp.eq.s32.totalorder %v1056, 1
    %vm1089 = vcmp.eq.s32.totalorder %v1057, 1
    %vm1090 = vcmp.eq.s32.totalorder %v1058, 1
    %vm1091 = vcmp.eq.s32.totalorder %v1059, 1
    %vm1092 = vcmp.eq.s32.totalorder %v1060, 1
    %vm1093 = vcmp.eq.s32.totalorder %v1061, 1
    %vm1094 = vcmp.eq.s32.totalorder %v1062, 1
    %vm1095 = vcmp.eq.s32.totalorder %v1063, 1
    %vm1096 = vcmp.eq.s32.totalorder %v1064, 1
    %vm1097 = vcmp.eq.s32.totalorder %v1065, 1
    %vm1098 = vcmp.eq.s32.totalorder %v1066, 1
    %vm1099 = vcmp.eq.s32.totalorder %v1067, 1
    %vm1100 = vcmp.eq.s32.totalorder %v1068, 1
    %vm1101 = vcmp.eq.s32.totalorder %v1069, 1
    %vm1102 = vcmp.eq.s32.totalorder %v1070, 1
    %vm1103 = vcmp.eq.s32.totalorder %v1071, 1
    %vm1104 = vcmp.eq.s32.totalorder %v1072, 1
    %vm1105 = vcmp.eq.s32.totalorder %v1073, 1
    %vm1106 = vcmp.eq.s32.totalorder %v1074, 1
    %vm1107 = vcmp.eq.s32.totalorder %v1075, 1
    %v1108 = vsel %vm1076, 0.0, %v1010
    %v1109 = vsel %vm1077, 0.0, %v1009
    %v1110 = vsel %vm1078, 0.0, %v1008
    %v1111 = vsel %vm1079, 0.0, %v1007
    %v1112 = vsel %vm1080, 0.0, %v1006
    %v1113 = vsel %vm1081, 0.0, %v1005
    %v1114 = vsel %vm1082, 0.0, %v1004
    %v1115 = vsel %vm1083, 0.0, %v1003
    %v1116 = vsel %vm1084, 0.0, %v1002
    %v1117 = vsel %vm1085, 0.0, %v1001
    %v1118 = vsel %vm1086, 0.0, %v1000
    %v1119 = vsel %vm1087, 0.0, %v999
    %v1120 = vsel %vm1088, 0.0, %v998
    %v1121 = vsel %vm1089, 0.0, %v997
    %v1122 = vsel %vm1090, 0.0, %v996
    %v1123 = vsel %vm1091, 0.0, %v995
    %v1124 = vsel %vm1092, 0.0, %v994
    %v1125 = vsel %vm1093, 0.0, %v993
    %v1126 = vsel %vm1094, 0.0, %v992
    %v1127 = vsel %vm1095, 0.0, %v991
    %v1128 = vsel %vm1096, 0.0, %v990
    %v1129 = vsel %vm1097, 0.0, %v989
    %v1130 = vsel %vm1098, 0.0, %v988
    %v1131 = vsel %vm1099, 0.0, %v987
    %v1132 = vsel %vm1100, 0.0, %v986
    %v1133 = vsel %vm1101, 0.0, %v985
    %v1134 = vsel %vm1102, 0.0, %v984
    %v1135 = vsel %vm1103, 0.0, %v983
    %v1136 = vsel %vm1104, 0.0, %v982
    %v1137 = vsel %vm1105, 0.0, %v981
    %v1138 = vsel %vm1106, 0.0, %v980
    %v1139 = vsel %vm1107, 0.0, %v1011
    %1172 = vrot.lane.b32.xlu0 %v1108, 8
    %v1173 = vpop.permute.xlu0 %1172
    %1174 = vrot.lane.b32.xlu0 %v1109, 8
    %v1175 = vpop.permute.xlu0 %1174
    %1176 = vrot.lane.b32.xlu0 %v1110, 8
    %v1177 = vpop.permute.xlu0 %1176
    %1178 = vrot.lane.b32.xlu0 %v1111, 8
    %v1179 = vpop.permute.xlu0 %1178
    %1180 = vrot.lane.b32.xlu0 %v1112, 8
    %v1181 = vpop.permute.xlu0 %1180
    %1182 = vrot.lane.b32.xlu0 %v1113, 8
    %v1183 = vpop.permute.xlu0 %1182
    %1184 = vrot.lane.b32.xlu0 %v1114, 8
    %v1185 = vpop.permute.xlu0 %1184
    %1186 = vrot.lane.b32.xlu0 %v1115, 8
    %v1187 = vpop.permute.xlu0 %1186
    %1188 = vrot.lane.b32.xlu0 %v1116, 8
    %v1189 = vpop.permute.xlu0 %1188
    %1190 = vrot.lane.b32.xlu0 %v1117, 8
    %v1191 = vpop.permute.xlu0 %1190
    %1192 = vrot.lane.b32.xlu0 %v1118, 8
    %v1193 = vpop.permute.xlu0 %1192
    %1194 = vrot.lane.b32.xlu0 %v1119, 8
    %v1195 = vpop.permute.xlu0 %1194
    %1196 = vrot.lane.b32.xlu0 %v1120, 8
    %v1197 = vpop.permute.xlu0 %1196
    %1198 = vrot.lane.b32.xlu0 %v1121, 8
    %v1199 = vpop.permute.xlu0 %1198
    %1200 = vrot.lane.b32.xlu0 %v1122, 8
    %v1201 = vpop.permute.xlu0 %1200
    %1202 = vrot.lane.b32.xlu0 %v1123, 8
    %v1203 = vpop.permute.xlu0 %1202
    %1204 = vrot.lane.b32.xlu0 %v1124, 8
    %v1205 = vpop.permute.xlu0 %1204
    %1206 = vrot.lane.b32.xlu0 %v1125, 8
    %v1207 = vpop.permute.xlu0 %1206
    %1208 = vrot.lane.b32.xlu0 %v1126, 8
    %v1209 = vpop.permute.xlu0 %1208
    %1210 = vrot.lane.b32.xlu0 %v1127, 8
    %v1211 = vpop.permute.xlu0 %1210
    %1212 = vrot.lane.b32.xlu0 %v1128, 8
    %v1213 = vpop.permute.xlu0 %1212
    %1214 = vrot.lane.b32.xlu0 %v1129, 8
    %v1215 = vpop.permute.xlu0 %1214
    %1216 = vrot.lane.b32.xlu0 %v1130, 8
    %v1217 = vpop.permute.xlu0 %1216
    %1218 = vrot.lane.b32.xlu0 %v1131, 8
    %v1219 = vpop.permute.xlu0 %1218
    %1220 = vrot.lane.b32.xlu0 %v1132, 8
    %v1221 = vpop.permute.xlu0 %1220
    %1222 = vrot.lane.b32.xlu0 %v1133, 8
    %v1223 = vpop.permute.xlu0 %1222
    %1224 = vrot.lane.b32.xlu0 %v1134, 8
    %v1225 = vpop.permute.xlu0 %1224
    %1226 = vrot.lane.b32.xlu0 %v1135, 8
    %v1227 = vpop.permute.xlu0 %1226
    %1228 = vrot.lane.b32.xlu0 %v1136, 8
    %v1229 = vpop.permute.xlu0 %1228
    %1230 = vrot.lane.b32.xlu0 %v1137, 8
    %v1231 = vpop.permute.xlu0 %1230
    %1232 = vrot.lane.b32.xlu0 %v1138, 8
    %v1233 = vpop.permute.xlu0 %1232
    %1234 = vrot.lane.b32.xlu0 %v1139, 8
    %v1235 = vpop.permute.xlu0 %1234
    %v1268 = vadd.f32 %v787, %v1173
    %v1269 = vadd.f32 %v788, %v1175
    %v1270 = vadd.f32 %v789, %v1177
    %v1271 = vadd.f32 %v790, %v1179
    %v1272 = vadd.f32 %v791, %v1181
    %v1273 = vadd.f32 %v792, %v1183
    %v1274 = vadd.f32 %v793, %v1185
    %v1275 = vadd.f32 %v794, %v1187
    %v1276 = vadd.f32 %v795, %v1189
    %v1277 = vadd.f32 %v796, %v1191
    %v1278 = vadd.f32 %v797, %v1193
    %v1279 = vadd.f32 %v798, %v1195
    %v1280 = vadd.f32 %v799, %v1197
    %v1281 = vadd.f32 %v800, %v1199
    %v1282 = vadd.f32 %v801, %v1201
    %v1283 = vadd.f32 %v802, %v1203
    %v1284 = vadd.f32 %v803, %v1205
    %v1285 = vadd.f32 %v804, %v1207
    %v1286 = vadd.f32 %v805, %v1209
    %v1287 = vadd.f32 %v806, %v1211
    %v1288 = vadd.f32 %v807, %v1213
    %v1289 = vadd.f32 %v808, %v1215
    %v1290 = vadd.f32 %v809, %v1217
    %v1291 = vadd.f32 %v810, %v1219
    %v1292 = vadd.f32 %v811, %v1221
    %v1293 = vadd.f32 %v812, %v1223
    %v1294 = vadd.f32 %v813, %v1225
    %v1295 = vadd.f32 %v814, %v1227
    %v1296 = vadd.f32 %v815, %v1229
    %v1297 = vadd.f32 %v816, %v1231
    %v1298 = vadd.f32 %v817, %v1233
    %v1299 = vadd.f32 %v818, %v1235
    %1332 = vrot.lane.b32.xlu0 %v1268, 120
    %v1333 = vpop.permute.xlu0 %1332
    %1334 = vrot.lane.b32.xlu0 %v1269, 120
    %v1335 = vpop.permute.xlu0 %1334
    %1336 = vrot.lane.b32.xlu0 %v1270, 120
    %v1337 = vpop.permute.xlu0 %1336
    %1338 = vrot.lane.b32.xlu0 %v1271, 120
    %v1339 = vpop.permute.xlu0 %1338
    %1340 = vrot.lane.b32.xlu0 %v1272, 120
    %v1341 = vpop.permute.xlu0 %1340
    %1342 = vrot.lane.b32.xlu0 %v1273, 120
    %v1343 = vpop.permute.xlu0 %1342
    %1344 = vrot.lane.b32.xlu0 %v1274, 120
    %v1345 = vpop.permute.xlu0 %1344
    %1346 = vrot.lane.b32.xlu0 %v1275, 120
    %v1347 = vpop.permute.xlu0 %1346
    %1348 = vrot.lane.b32.xlu0 %v1276, 120
    %v1349 = vpop.permute.xlu0 %1348
    %1350 = vrot.lane.b32.xlu0 %v1277, 120
    %v1351 = vpop.permute.xlu0 %1350
    %1352 = vrot.lane.b32.xlu0 %v1278, 120
    %v1353 = vpop.permute.xlu0 %1352
    %1354 = vrot.lane.b32.xlu0 %v1279, 120
    %v1355 = vpop.permute.xlu0 %1354
    %1356 = vrot.lane.b32.xlu0 %v1280, 120
    %v1357 = vpop.permute.xlu0 %1356
    %1358 = vrot.lane.b32.xlu0 %v1281, 120
    %v1359 = vpop.permute.xlu0 %1358
    %1360 = vrot.lane.b32.xlu0 %v1282, 120
    %v1361 = vpop.permute.xlu0 %1360
    %1362 = vrot.lane.b32.xlu0 %v1283, 120
    %v1363 = vpop.permute.xlu0 %1362
    %1364 = vrot.lane.b32.xlu0 %v1284, 120
    %v1365 = vpop.permute.xlu0 %1364
    %1366 = vrot.lane.b32.xlu0 %v1285, 120
    %v1367 = vpop.permute.xlu0 %1366
    %1368 = vrot.lane.b32.xlu0 %v1286, 120
    %v1369 = vpop.permute.xlu0 %1368
    %1370 = vrot.lane.b32.xlu0 %v1287, 120
    %v1371 = vpop.permute.xlu0 %1370
    %1372 = vrot.lane.b32.xlu0 %v1288, 120
    %v1373 = vpop.permute.xlu0 %1372
    %1374 = vrot.lane.b32.xlu0 %v1289, 120
    %v1375 = vpop.permute.xlu0 %1374
    %1376 = vrot.lane.b32.xlu0 %v1290, 120
    %v1377 = vpop.permute.xlu0 %1376
    %1378 = vrot.lane.b32.xlu0 %v1291, 120
    %v1379 = vpop.permute.xlu0 %1378
    %1380 = vrot.lane.b32.xlu0 %v1292, 120
    %v1381 = vpop.permute.xlu0 %1380
    %1382 = vrot.lane.b32.xlu0 %v1293, 120
    %v1383 = vpop.permute.xlu0 %1382
    %1384 = vrot.lane.b32.xlu0 %v1294, 120
    %v1385 = vpop.permute.xlu0 %1384
    %1386 = vrot.lane.b32.xlu0 %v1295, 120
    %v1387 = vpop.permute.xlu0 %1386
    %1388 = vrot.lane.b32.xlu0 %v1296, 120
    %v1389 = vpop.permute.xlu0 %1388
    %1390 = vrot.lane.b32.xlu0 %v1297, 120
    %v1391 = vpop.permute.xlu0 %1390
    %1392 = vrot.lane.b32.xlu0 %v1298, 120
    %v1393 = vpop.permute.xlu0 %1392
    %1394 = vrot.lane.b32.xlu0 %v1299, 120
    %v1395 = vpop.permute.xlu0 %1394
    %vm1428 = vcmask 64512
    %1429 = vst.msk [vmem:[#allocation2] sm:$0xff] %vm1428, %v1333
    %1430 = vst.msk [vmem:[#allocation2 + $0x8] sm:$0xff] %vm1428, %v1335
    %1431 = vst.msk [vmem:[#allocation2 + $0x10] sm:$0xff] %vm1428, %v1337
    %1432 = vst.msk [vmem:[#allocation2 + $0x18] sm:$0xff] %vm1428, %v1339
    %1433 = vst.msk [vmem:[#allocation2 + $0x20] sm:$0xff] %vm1428, %v1341
    %1434 = vst.msk [vmem:[#allocation2 + $0x28] sm:$0xff] %vm1428, %v1343
    %1435 = vst.msk [vmem:[#allocation2 + $0x30] sm:$0xff] %vm1428, %v1345
    %1436 = vst.msk [vmem:[#allocation2 + $0x38] sm:$0xff] %vm1428, %v1347
    %1437 = vst.msk [vmem:[#allocation2 + $0x40] sm:$0xff] %vm1428, %v1349
    %1438 = vst.msk [vmem:[#allocation2 + $0x48] sm:$0xff] %vm1428, %v1351
    %1439 = vst.msk [vmem:[#allocation2 + $0x50] sm:$0xff] %vm1428, %v1353
    %1440 = vst.msk [vmem:[#allocation2 + $0x58] sm:$0xff] %vm1428, %v1355
    %1441 = vst.msk [vmem:[#allocation2 + $0x60] sm:$0xff] %vm1428, %v1357
    %1442 = vst.msk [vmem:[#allocation2 + $0x68] sm:$0xff] %vm1428, %v1359
    %1443 = vst.msk [vmem:[#allocation2 + $0x70] sm:$0xff] %vm1428, %v1361
    %1444 = vst.msk [vmem:[#allocation2 + $0x78] sm:$0xff] %vm1428, %v1363
    %1445 = vst.msk [vmem:[#allocation2 + $0x80] sm:$0xff] %vm1428, %v1365
    %1446 = vst.msk [vmem:[#allocation2 + $0x88] sm:$0xff] %vm1428, %v1367
    %1447 = vst.msk [vmem:[#allocation2 + $0x90] sm:$0xff] %vm1428, %v1369
    %1448 = vst.msk [vmem:[#allocation2 + $0x98] sm:$0xff] %vm1428, %v1371
    %1449 = vst.msk [vmem:[#allocation2 + $0xa0] sm:$0xff] %vm1428, %v1373
    %1450 = vst.msk [vmem:[#allocation2 + $0xa8] sm:$0xff] %vm1428, %v1375
    %1451 = vst.msk [vmem:[#allocation2 + $0xb0] sm:$0xff] %vm1428, %v1377
    %1452 = vst.msk [vmem:[#allocation2 + $0xb8] sm:$0xff] %vm1428, %v1379
    %1453 = vst.msk [vmem:[#allocation2 + $0xc0] sm:$0xff] %vm1428, %v1381
    %1454 = vst.msk [vmem:[#allocation2 + $0xc8] sm:$0xff] %vm1428, %v1383
    %1455 = vst.msk [vmem:[#allocation2 + $0xd0] sm:$0xff] %vm1428, %v1385
    %1456 = vst.msk [vmem:[#allocation2 + $0xd8] sm:$0xff] %vm1428, %v1387
    %1457 = vst.msk [vmem:[#allocation2 + $0xe0] sm:$0xff] %vm1428, %v1389
    %1458 = vst.msk [vmem:[#allocation2 + $0xe8] sm:$0xff] %vm1428, %v1391
    %1459 = vst.msk [vmem:[#allocation2 + $0xf0] sm:$0xff] %vm1428, %v1393
    %1460 = vst.msk [vmem:[#allocation2 + $0xf8] sm:$0xff] %vm1428, %v1395
    %v1461 = vld [vmem:[#allocation2] ss:$2 sm:$0xff]
    %s1462 = scalar_lea.vmem [#allocation2], 16
    %v1463 = vld [vmem:[%s1462] ss:$2 sm:$0xff]
    %s1464 = scalar_lea.vmem [#allocation2], 32
    %v1465 = vld [vmem:[%s1464] ss:$2 sm:$0xff]
    %s1466 = scalar_lea.vmem [#allocation2], 48
    %v1467 = vld [vmem:[%s1466] ss:$2 sm:$0xff]
    %s1468 = scalar_lea.vmem [#allocation2], 64
    %v1469 = vld [vmem:[%s1468] ss:$2 sm:$0xff]
    %s1470 = scalar_lea.vmem [#allocation2], 80
    %v1471 = vld [vmem:[%s1470] ss:$2 sm:$0xff]
    %s1472 = scalar_lea.vmem [#allocation2], 96
    %v1473 = vld [vmem:[%s1472] ss:$2 sm:$0xff]
    %s1474 = scalar_lea.vmem [#allocation2], 112
    %v1475 = vld [vmem:[%s1474] ss:$2 sm:$0xff]
    %s1476 = scalar_lea.vmem [#allocation2], 128
    %v1477 = vld [vmem:[%s1476] ss:$2 sm:$0xff]
    %s1478 = scalar_lea.vmem [#allocation2], 144
    %v1479 = vld [vmem:[%s1478] ss:$2 sm:$0xff]
    %s1480 = scalar_lea.vmem [#allocation2], 160
    %v1481 = vld [vmem:[%s1480] ss:$2 sm:$0xff]
    %s1482 = scalar_lea.vmem [#allocation2], 176
    %v1483 = vld [vmem:[%s1482] ss:$2 sm:$0xff]
    %s1484 = scalar_lea.vmem [#allocation2], 192
    %v1485 = vld [vmem:[%s1484] ss:$2 sm:$0xff]
    %s1486 = scalar_lea.vmem [#allocation2], 208
    %v1487 = vld [vmem:[%s1486] ss:$2 sm:$0xff]
    %s1488 = scalar_lea.vmem [#allocation2], 224
    %v1489 = vld [vmem:[%s1488] ss:$2 sm:$0xff]
    %s1490 = scalar_lea.vmem [#allocation2], 240
    %v1491 = vld [vmem:[%s1490] ss:$2 sm:$0xff]
    %s1492 = scalar_lea.vmem [#allocation2], 1
    %v1493 = vld [vmem:[%s1492] ss:$2 sm:$0xff]
    %s1494 = scalar_lea.vmem [#allocation2], 17
    %v1495 = vld [vmem:[%s1494] ss:$2 sm:$0xff]
    %s1496 = scalar_lea.vmem [#allocation2], 33
    %v1497 = vld [vmem:[%s1496] ss:$2 sm:$0xff]
    %s1498 = scalar_lea.vmem [#allocation2], 49
    %v1499 = vld [vmem:[%s1498] ss:$2 sm:$0xff]
    %s1500 = scalar_lea.vmem [#allocation2], 65
    %v1501 = vld [vmem:[%s1500] ss:$2 sm:$0xff]
    %s1502 = scalar_lea.vmem [#allocation2], 81
    %v1503 = vld [vmem:[%s1502] ss:$2 sm:$0xff]
    %s1504 = scalar_lea.vmem [#allocation2], 97
    %v1505 = vld [vmem:[%s1504] ss:$2 sm:$0xff]
    %s1506 = scalar_lea.vmem [#allocation2], 113
    %v1507 = vld [vmem:[%s1506] ss:$2 sm:$0xff]
    %s1508 = scalar_lea.vmem [#allocation2], 129
    %v1509 = vld [vmem:[%s1508] ss:$2 sm:$0xff]
    %s1510 = scalar_lea.vmem [#allocation2], 145
    %v1511 = vld [vmem:[%s1510] ss:$2 sm:$0xff]
    %s1512 = scalar_lea.vmem [#allocation2], 161
    %v1513 = vld [vmem:[%s1512] ss:$2 sm:$0xff]
    %s1514 = scalar_lea.vmem [#allocation2], 177
    %v1515 = vld [vmem:[%s1514] ss:$2 sm:$0xff]
    %s1516 = scalar_lea.vmem [#allocation2], 193
    %v1517 = vld [vmem:[%s1516] ss:$2 sm:$0xff]
    %s1518 = scalar_lea.vmem [#allocation2], 209
    %v1519 = vld [vmem:[%s1518] ss:$2 sm:$0xff]
    %s1520 = scalar_lea.vmem [#allocation2], 225
    %v1521 = vld [vmem:[%s1520] ss:$2 sm:$0xff]
    %s1522 = scalar_lea.vmem [#allocation2], 241
    %v1523 = vld [vmem:[%s1522] ss:$2 sm:$0xff]
    %v1524 = vrot.slane %v1493, 7
    %v1525 = vrot.slane %v1495, 7
    %v1526 = vrot.slane %v1497, 7
    %v1527 = vrot.slane %v1499, 7
    %v1528 = vrot.slane %v1501, 7
    %v1529 = vrot.slane %v1503, 7
    %v1530 = vrot.slane %v1505, 7
    %v1531 = vrot.slane %v1507, 7
    %v1532 = vrot.slane %v1509, 7
    %v1533 = vrot.slane %v1511, 7
    %v1534 = vrot.slane %v1513, 7
    %v1535 = vrot.slane %v1515, 7
    %v1536 = vrot.slane %v1517, 7
    %v1537 = vrot.slane %v1519, 7
    %v1538 = vrot.slane %v1521, 7
    %v1539 = vrot.slane %v1523, 7
    %v1540 = vsel %vm498, %v1538, %v1539
    %v1541 = vsel %vm498, %v1537, %v1538
    %v1542 = vsel %vm498, %v1536, %v1537
    %v1543 = vsel %vm498, %v1535, %v1536
    %v1544 = vsel %vm498, %v1534, %v1535
    %v1545 = vsel %vm498, %v1533, %v1534
    %v1546 = vsel %vm498, %v1532, %v1533
    %v1547 = vsel %vm498, %v1531, %v1532
    %v1548 = vsel %vm498, %v1530, %v1531
    %v1549 = vsel %vm498, %v1529, %v1530
    %v1550 = vsel %vm498, %v1528, %v1529
    %v1551 = vsel %vm498, %v1527, %v1528
    %v1552 = vsel %vm498, %v1526, %v1527
    %v1553 = vsel %vm498, %v1525, %v1526
    %v1554 = vsel %vm498, %v1524, %v1525
    %v1555 = vsel %vm498, %v1539, %v1524
    %v1556 = vsel %vm595, -inf, %v1555
    %v1557 = vsel %vm596, -inf, %v1554
    %v1558 = vsel %vm597, -inf, %v1553
    %v1559 = vsel %vm598, -inf, %v1552
    %v1560 = vsel %vm599, -inf, %v1551
    %v1561 = vsel %vm600, -inf, %v1550
    %v1562 = vsel %vm601, -inf, %v1549
    %v1563 = vsel %vm602, -inf, %v1548
    %v1564 = vsel %vm603, -inf, %v1547
    %v1565 = vsel %vm604, -inf, %v1546
    %v1566 = vsel %vm605, -inf, %v1545
    %v1567 = vsel %vm606, -inf, %v1544
    %v1568 = vsel %vm607, -inf, %v1543
    %v1569 = vsel %vm608, -inf, %v1542
    %v1570 = vsel %vm609, -inf, %v1541
    %v1571 = vsel %vm610, -inf, %v1540
    %v1572 = vmax.f32 %v1461, %v1493
    %v1573 = vmax.f32 %v1463, %v1495
    %v1574 = vmax.f32 %v1465, %v1497
    %v1575 = vmax.f32 %v1467, %v1499
    %v1576 = vmax.f32 %v1469, %v1501
    %v1577 = vmax.f32 %v1471, %v1503
    %v1578 = vmax.f32 %v1473, %v1505
    %v1579 = vmax.f32 %v1475, %v1507
    %v1580 = vmax.f32 %v1477, %v1509
    %v1581 = vmax.f32 %v1479, %v1511
    %v1582 = vmax.f32 %v1481, %v1513
    %v1583 = vmax.f32 %v1483, %v1515
    %v1584 = vmax.f32 %v1485, %v1517
    %v1585 = vmax.f32 %v1487, %v1519
    %v1586 = vmax.f32 %v1489, %v1521
    %v1587 = vmax.f32 %v1491, %v1523
    %v1588 = vmax.f32 %v1572, %v1556
    %v1589 = vmax.f32 %v1573, %v1557
    %v1590 = vmax.f32 %v1574, %v1558
    %v1591 = vmax.f32 %v1575, %v1559
    %v1592 = vmax.f32 %v1576, %v1560
    %v1593 = vmax.f32 %v1577, %v1561
    %v1594 = vmax.f32 %v1578, %v1562
    %v1595 = vmax.f32 %v1579, %v1563
    %v1596 = vmax.f32 %v1580, %v1564
    %v1597 = vmax.f32 %v1581, %v1565
    %v1598 = vmax.f32 %v1582, %v1566
    %v1599 = vmax.f32 %v1583, %v1567
    %v1600 = vmax.f32 %v1584, %v1568
    %v1601 = vmax.f32 %v1585, %v1569
    %v1602 = vmax.f32 %v1586, %v1570
    %v1603 = vmax.f32 %v1587, %v1571
    %v1604 = vld [vmem:[%s3] sm:$0xff]
    %v1606 = vsel %vm1428, %v1588, 0
    %v1609 = vsel %vm1428, %v1589, 0
    %v1612 = vsel %vm1428, %v1590, 0
    %v1615 = vsel %vm1428, %v1591, 0
    %v1618 = vsel %vm1428, %v1592, 0
    %v1621 = vsel %vm1428, %v1593, 0
    %v1624 = vsel %vm1428, %v1594, 0
    %v1627 = vsel %vm1428, %v1595, 0
    %v1630 = vsel %vm1428, %v1596, 0
    %v1633 = vsel %vm1428, %v1597, 0
    %v1636 = vsel %vm1428, %v1598, 0
    %v1639 = vsel %vm1428, %v1599, 0
    %v1642 = vsel %vm1428, %v1600, 0
    %v1645 = vsel %vm1428, %v1601, 0
    %v1648 = vsel %vm1428, %v1602, 0
    %v1651 = vsel %vm1428, %v1603, 0
    %1653 = vmatprep.subr.mxu0 0.0
    %1654 = vmatpush1.msra.mxu0 %v1604
    %1655 = vmatprep.subr.mxu0 0.0
    %1656 = vmatpush1.msra.mxu0 0.0
    %1657 = vmatprep.subr.mxu0 0.0
    %1658 = vmatpush1.msra.mxu0 0.0
    %1659 = vmatprep.subr.mxu0 0.0
    %1660 = vmatpush1.msra.mxu0 0.0
    %1661 = vmatprep.subr.mxu0 0.0
    %1662 = vmatpush1.msra.mxu0 0.0
    %1663 = vmatprep.subr.mxu0 0.0
    %1664 = vmatpush1.msra.mxu0 0.0
    %1665 = vmatprep.subr.mxu0 0.0
    %1666 = vmatpush1.msra.mxu0 0.0
    %1667 = vmatprep.subr.mxu0 0.0
    %1668 = vmatpush1.msra.mxu0 0.0
    %1669 = vmatprep.subr.mxu0 0.0
    %1670 = vmatpush1.msra.mxu0 0.0
    %1671 = vmatprep.subr.mxu0 0.0
    %1672 = vmatpush1.msra.mxu0 0.0
    %1673 = vmatprep.subr.mxu0 0.0
    %1674 = vmatpush1.msra.mxu0 0.0
    %1675 = vmatprep.subr.mxu0 0.0
    %1676 = vmatpush1.msra.mxu0 0.0
    %1677 = vmatprep.subr.mxu0 0.0
    %1678 = vmatpush1.msra.mxu0 0.0
    %1679 = vmatprep.subr.mxu0 0.0
    %1680 = vmatpush1.msra.mxu0 0.0
    %1681 = vmatprep.subr.mxu0 0.0
    %1682 = vmatpush1.msra.mxu0 0.0
    %1683 = vmatprep.subr.mxu0 0.0
    %1684 = vmatpush1.msra.mxu0 0.0
    %1685 = vmatprep.subr.mxu0 0.0
    %1686 = vmatpush1.msra.mxu0 0.0
    %1687 = vmatprep.subr.mxu0 0.0
    %1688 = vmatpush1.msra.mxu0 0.0
    %1689 = vmatprep.subr.mxu0 0.0
    %1690 = vmatpush1.msra.mxu0 0.0
    %1691 = vmatprep.subr.mxu0 0.0
    %1692 = vmatpush1.msra.mxu0 0.0
    %1693 = vmatprep.subr.mxu0 0.0
    %1694 = vmatpush1.msra.mxu0 0.0
    %1695 = vmatprep.subr.mxu0 0.0
    %1696 = vmatpush1.msra.mxu0 0.0
    %1697 = vmatprep.subr.mxu0 0.0
    %1698 = vmatpush1.msra.mxu0 0.0
    %1699 = vmatprep.subr.mxu0 0.0
    %1700 = vmatpush1.msra.mxu0 0.0
    %1701 = vmatprep.subr.mxu0 0.0
    %1702 = vmatpush1.msra.mxu0 0.0
    %1703 = vmatprep.subr.mxu0 0.0
    %1704 = vmatpush1.msra.mxu0 0.0
    %1705 = vmatprep.subr.mxu0 0.0
    %1706 = vmatpush1.msra.mxu0 0.0
    %1707 = vmatprep.subr.mxu0 0.0
    %1708 = vmatpush1.msra.mxu0 0.0
    %1709 = vmatprep.subr.mxu0 0.0
    %1710 = vmatpush1.msra.mxu0 0.0
    %1711 = vmatprep.subr.mxu0 0.0
    %1712 = vmatpush1.msra.mxu0 0.0
    %1713 = vmatprep.subr.mxu0 0.0
    %1714 = vmatpush1.msra.mxu0 0.0
    %1715 = vmatprep.subr.mxu0 0.0
    %1716 = vmatpush1.msra.mxu0 0.0
    %1717 = vmatprep.mubr.f32.mxu0 0.0
    %1718 = vmatmul.mubr.f32.gmra.mrb[0].mxu0 %v1606
    %v1719 = vpop.f32.mrb[0].mxu0
    %v1720 = vadd.f32 0.0, %v1719
    %v1721 = vpop.f32.mrb[0].mxu0
    %1722 = vmatprep.mubr.f32.mxu0 0.0
    %1723 = vmatmul.mubr.f32.gmra.mrb[0].mxu0 %v1609
    %v1724 = vpop.f32.mrb[0].mxu0
    %v1725 = vadd.f32 0.0, %v1724
    %v1726 = vpop.f32.mrb[0].mxu0
    %1727 = vmatprep.mubr.f32.mxu0 0.0
    %1728 = vmatmul.mubr.f32.gmra.mrb[0].mxu0 %v1612
    %v1729 = vpop.f32.mrb[0].mxu0
    %v1730 = vadd.f32 0.0, %v1729
    %v1731 = vpop.f32.mrb[0].mxu0
    %1732 = vmatprep.mubr.f32.mxu0 0.0
    %1733 = vmatmul.mubr.f32.gmra.mrb[0].mxu0 %v1615
    %v1734 = vpop.f32.mrb[0].mxu0
    %v1735 = vadd.f32 0.0, %v1734
    %v1736 = vpop.f32.mrb[0].mxu0
    %1737 = vmatprep.mubr.f32.mxu0 0.0
    %1738 = vmatmul.mubr.f32.gmra.mrb[0].mxu0 %v1618
    %v1739 = vpop.f32.mrb[0].mxu0
    %v1740 = vadd.f32 0.0, %v1739
    %v1741 = vpop.f32.mrb[0].mxu0
    %1742 = vmatprep.mubr.f32.mxu0 0.0
    %1743 = vmatmul.mubr.f32.gmra.mrb[0].mxu0 %v1621
    %v1744 = vpop.f32.mrb[0].mxu0
    %v1745 = vadd.f32 0.0, %v1744
    %v1746 = vpop.f32.mrb[0].mxu0
    %1747 = vmatprep.mubr.f32.mxu0 0.0
    %1748 = vmatmul.mubr.f32.gmra.mrb[0].mxu0 %v1624
    %v1749 = vpop.f32.mrb[0].mxu0
    %v1750 = vadd.f32 0.0, %v1749
    %v1751 = vpop.f32.mrb[0].mxu0
    %1752 = vmatprep.mubr.f32.mxu0 0.0
    %1753 = vmatmul.mubr.f32.gmra.mrb[0].mxu0 %v1627
    %v1754 = vpop.f32.mrb[0].mxu0
    %v1755 = vadd.f32 0.0, %v1754
    %v1756 = vpop.f32.mrb[0].mxu0
    %1757 = vmatprep.mubr.f32.mxu0 0.0
    %1758 = vmatmul.mubr.f32.gmra.mrb[0].mxu0 %v1630
    %v1759 = vpop.f32.mrb[0].mxu0
    %v1760 = vadd.f32 0.0, %v1759
    %v1761 = vpop.f32.mrb[0].mxu0
    %1762 = vmatprep.mubr.f32.mxu0 0.0
    %1763 = vmatmul.mubr.f32.gmra.mrb[0].mxu0 %v1633
    %v1764 = vpop.f32.mrb[0].mxu0
    %v1765 = vadd.f32 0.0, %v1764
    %v1766 = vpop.f32.mrb[0].mxu0
    %1767 = vmatprep.mubr.f32.mxu0 0.0
    %1768 = vmatmul.mubr.f32.gmra.mrb[0].mxu0 %v1636
    %v1769 = vpop.f32.mrb[0].mxu0
    %v1770 = vadd.f32 0.0, %v1769
    %v1771 = vpop.f32.mrb[0].mxu0
    %1772 = vmatprep.mubr.f32.mxu0 0.0
    %1773 = vmatmul.mubr.f32.gmra.mrb[0].mxu0 %v1639
    %v1774 = vpop.f32.mrb[0].mxu0
    %v1775 = vadd.f32 0.0, %v1774
    %v1776 = vpop.f32.mrb[0].mxu0
    %1777 = vmatprep.mubr.f32.mxu0 0.0
    %1778 = vmatmul.mubr.f32.gmra.mrb[0].mxu0 %v1642
    %v1779 = vpop.f32.mrb[0].mxu0
    %v1780 = vadd.f32 0.0, %v1779
    %v1781 = vpop.f32.mrb[0].mxu0
    %1782 = vmatprep.mubr.f32.mxu0 0.0
    %1783 = vmatmul.mubr.f32.gmra.mrb[0].mxu0 %v1645
    %v1784 = vpop.f32.mrb[0].mxu0
    %v1785 = vadd.f32 0.0, %v1784
    %v1786 = vpop.f32.mrb[0].mxu0
    %1787 = vmatprep.mubr.f32.mxu0 0.0
    %1788 = vmatmul.mubr.f32.gmra.mrb[0].mxu0 %v1648
    %v1789 = vpop.f32.mrb[0].mxu0
    %v1790 = vadd.f32 0.0, %v1789
    %v1791 = vpop.f32.mrb[0].mxu0
    %1792 = vmatprep.mubr.f32.mxu0 0.0
    %1793 = vmatmul.mubr.f32.gmra.mrb[0].mxu0 %v1651
    %v1794 = vpop.f32.mrb[0].mxu0
    %v1795 = vadd.f32 0.0, %v1794
    %v1796 = vpop.f32.mrb[0].mxu0
    %1797 = vdwg.mxu0
    %v1798 = vld [vmem:[%s4] sm:$0x1]
    %v1800 = vlaneseq
    %v1801 = vshrl.u32 %v1800, 7
    %v1802 = vsub.s32 0, %v1801
    %v1803 = vrot.slane %v1798, %v1802
    %1804 = vrot.lane.b32.xlu0 %v1803, 16
    %v1805 = vpop.permute.xlu0 %1804
    %v1807 = vadd.f32 %v1720, %v1805
    %v1808 = vadd.f32 %v1725, %v1805
    %v1809 = vadd.f32 %v1730, %v1805
    %v1810 = vadd.f32 %v1735, %v1805
    %v1811 = vadd.f32 %v1740, %v1805
    %v1812 = vadd.f32 %v1745, %v1805
    %v1813 = vadd.f32 %v1750, %v1805
    %v1814 = vadd.f32 %v1755, %v1805
    %v1815 = vadd.f32 %v1760, %v1805
    %v1816 = vadd.f32 %v1765, %v1805
    %v1817 = vadd.f32 %v1770, %v1805
    %v1818 = vadd.f32 %v1775, %v1805
    %v1819 = vadd.f32 %v1780, %v1805
    %v1820 = vadd.f32 %v1785, %v1805
    %v1821 = vadd.f32 %v1790, %v1805
    %v1822 = vadd.f32 %v1795, %v1805
    %v1823 = vrot.slane %v1720, 7
    %v1824 = vrot.slane %v1725, 7
    %v1825 = vrot.slane %v1730, 7
    %v1826 = vrot.slane %v1735, 7
    %v1827 = vrot.slane %v1740, 7
    %v1828 = vrot.slane %v1745, 7
    %v1829 = vrot.slane %v1750, 7
    %v1830 = vrot.slane %v1755, 7
    %v1831 = vrot.slane %v1760, 7
    %v1832 = vrot.slane %v1765, 7
    %v1833 = vrot.slane %v1770, 7
    %v1834 = vrot.slane %v1775, 7
    %v1835 = vrot.slane %v1780, 7
    %v1836 = vrot.slane %v1785, 7
    %v1837 = vrot.slane %v1790, 7
    %v1838 = vrot.slane %v1795, 7
    %v1839 = vsel %vm498, %v1837, %v1838
    %v1840 = vsel %vm498, %v1836, %v1837
    %v1841 = vsel %vm498, %v1835, %v1836
    %v1842 = vsel %vm498, %v1834, %v1835
    %v1843 = vsel %vm498, %v1833, %v1834
    %v1844 = vsel %vm498, %v1832, %v1833
    %v1845 = vsel %vm498, %v1831, %v1832
    %v1846 = vsel %vm498, %v1830, %v1831
    %v1847 = vsel %vm498, %v1829, %v1830
    %v1848 = vsel %vm498, %v1828, %v1829
    %v1849 = vsel %vm498, %v1827, %v1828
    %v1850 = vsel %vm498, %v1826, %v1827
    %v1851 = vsel %vm498, %v1825, %v1826
    %v1852 = vsel %vm498, %v1824, %v1825
    %v1853 = vsel %vm498, %v1823, %v1824
    %v1854 = vsel %vm498, %v1838, %v1823
    %v1855 = vsel %vm595, 0.0, %v1854
    %v1856 = vsel %vm596, 0.0, %v1853
    %v1857 = vsel %vm597, 0.0, %v1852
    %v1858 = vsel %vm598, 0.0, %v1851
    %v1859 = vsel %vm599, 0.0, %v1850
    %v1860 = vsel %vm600, 0.0, %v1849
    %v1861 = vsel %vm601, 0.0, %v1848
    %v1862 = vsel %vm602, 0.0, %v1847
    %v1863 = vsel %vm603, 0.0, %v1846
    %v1864 = vsel %vm604, 0.0, %v1845
    %v1865 = vsel %vm605, 0.0, %v1844
    %v1866 = vsel %vm606, 0.0, %v1843
    %v1867 = vsel %vm607, 0.0, %v1842
    %v1868 = vsel %vm608, 0.0, %v1841
    %v1869 = vsel %vm609, 0.0, %v1840
    %v1870 = vsel %vm610, 0.0, %v1839
    %1887 = vrot.lane.b32.xlu0 %v1855, 16
    %v1888 = vpop.permute.xlu0 %1887
    %1889 = vrot.lane.b32.xlu0 %v1856, 16
    %v1890 = vpop.permute.xlu0 %1889
    %1891 = vrot.lane.b32.xlu0 %v1857, 16
    %v1892 = vpop.permute.xlu0 %1891
    %1893 = vrot.lane.b32.xlu0 %v1858, 16
    %v1894 = vpop.permute.xlu0 %1893
    %1895 = vrot.lane.b32.xlu0 %v1859, 16
    %v1896 = vpop.permute.xlu0 %1895
    %1897 = vrot.lane.b32.xlu0 %v1860, 16
    %v1898 = vpop.permute.xlu0 %1897
    %1899 = vrot.lane.b32.xlu0 %v1861, 16
    %v1900 = vpop.permute.xlu0 %1899
    %1901 = vrot.lane.b32.xlu0 %v1862, 16
    %v1902 = vpop.permute.xlu0 %1901
    %1903 = vrot.lane.b32.xlu0 %v1863, 16
    %v1904 = vpop.permute.xlu0 %1903
    %1905 = vrot.lane.b32.xlu0 %v1864, 16
    %v1906 = vpop.permute.xlu0 %1905
    %1907 = vrot.lane.b32.xlu0 %v1865, 16
    %v1908 = vpop.permute.xlu0 %1907
    %1909 = vrot.lane.b32.xlu0 %v1866, 16
    %v1910 = vpop.permute.xlu0 %1909
    %1911 = vrot.lane.b32.xlu0 %v1867, 16
    %v1912 = vpop.permute.xlu0 %1911
    %1913 = vrot.lane.b32.xlu0 %v1868, 16
    %v1914 = vpop.permute.xlu0 %1913
    %1915 = vrot.lane.b32.xlu0 %v1869, 16
    %v1916 = vpop.permute.xlu0 %1915
    %1917 = vrot.lane.b32.xlu0 %v1870, 16
    %v1918 = vpop.permute.xlu0 %1917
    %v1935 = vadd.f32 %v1807, %v1888
    %v1936 = vadd.f32 %v1808, %v1890
    %v1937 = vadd.f32 %v1809, %v1892
    %v1938 = vadd.f32 %v1810, %v1894
    %v1939 = vadd.f32 %v1811, %v1896
    %v1940 = vadd.f32 %v1812, %v1898
    %v1941 = vadd.f32 %v1813, %v1900
    %v1942 = vadd.f32 %v1814, %v1902
    %v1943 = vadd.f32 %v1815, %v1904
    %v1944 = vadd.f32 %v1816, %v1906
    %v1945 = vadd.f32 %v1817, %v1908
    %v1946 = vadd.f32 %v1818, %v1910
    %v1947 = vadd.f32 %v1819, %v1912
    %v1948 = vadd.f32 %v1820, %v1914
    %v1949 = vadd.f32 %v1821, %v1916
    %v1950 = vadd.f32 %v1822, %v1918
    %1967 = vrot.lane.b32.xlu0 %v1720, 96
    %v1968 = vpop.permute.xlu0 %1967
    %1969 = vrot.lane.b32.xlu0 %v1725, 96
    %v1970 = vpop.permute.xlu0 %1969
    %1971 = vrot.lane.b32.xlu0 %v1730, 96
    %v1972 = vpop.permute.xlu0 %1971
    %1973 = vrot.lane.b32.xlu0 %v1735, 96
    %v1974 = vpop.permute.xlu0 %1973
    %1975 = vrot.lane.b32.xlu0 %v1740, 96
    %v1976 = vpop.permute.xlu0 %1975
    %1977 = vrot.lane.b32.xlu0 %v1745, 96
    %v1978 = vpop.permute.xlu0 %1977
    %1979 = vrot.lane.b32.xlu0 %v1750, 96
    %v1980 = vpop.permute.xlu0 %1979
    %1981 = vrot.lane.b32.xlu0 %v1755, 96
    %v1982 = vpop.permute.xlu0 %1981
    %1983 = vrot.lane.b32.xlu0 %v1760, 96
    %v1984 = vpop.permute.xlu0 %1983
    %1985 = vrot.lane.b32.xlu0 %v1765, 96
    %v1986 = vpop.permute.xlu0 %1985
    %1987 = vrot.lane.b32.xlu0 %v1770, 96
    %v1988 = vpop.permute.xlu0 %1987
    %1989 = vrot.lane.b32.xlu0 %v1775, 96
    %v1990 = vpop.permute.xlu0 %1989
    %1991 = vrot.lane.b32.xlu0 %v1780, 96
    %v1992 = vpop.permute.xlu0 %1991
    %1993 = vrot.lane.b32.xlu0 %v1785, 96
    %v1994 = vpop.permute.xlu0 %1993
    %1995 = vrot.lane.b32.xlu0 %v1790, 96
    %v1996 = vpop.permute.xlu0 %1995
    %1997 = vrot.lane.b32.xlu0 %v1795, 96
    %v1998 = vpop.permute.xlu0 %1997
    %v2015 = vrot.slane %v1968, 1
    %v2016 = vrot.slane %v1970, 1
    %v2017 = vrot.slane %v1972, 1
    %v2018 = vrot.slane %v1974, 1
    %v2019 = vrot.slane %v1976, 1
    %v2020 = vrot.slane %v1978, 1
    %v2021 = vrot.slane %v1980, 1
    %v2022 = vrot.slane %v1982, 1
    %v2023 = vrot.slane %v1984, 1
    %v2024 = vrot.slane %v1986, 1
    %v2025 = vrot.slane %v1988, 1
    %v2026 = vrot.slane %v1990, 1
    %v2027 = vrot.slane %v1992, 1
    %v2028 = vrot.slane %v1994, 1
    %v2029 = vrot.slane %v1996, 1
    %v2030 = vrot.slane %v1998, 1
    %v2031 = vsel %vm979, %v2029, %v2030
    %v2032 = vsel %vm979, %v2028, %v2029
    %v2033 = vsel %vm979, %v2027, %v2028
    %v2034 = vsel %vm979, %v2026, %v2027
    %v2035 = vsel %vm979, %v2025, %v2026
    %v2036 = vsel %vm979, %v2024, %v2025
    %v2037 = vsel %vm979, %v2023, %v2024
    %v2038 = vsel %vm979, %v2022, %v2023
    %v2039 = vsel %vm979, %v2021, %v2022
    %v2040 = vsel %vm979, %v2020, %v2021
    %v2041 = vsel %vm979, %v2019, %v2020
    %v2042 = vsel %vm979, %v2018, %v2019
    %v2043 = vsel %vm979, %v2017, %v2018
    %v2044 = vsel %vm979, %v2016, %v2017
    %v2045 = vsel %vm979, %v2015, %v2016
    %v2046 = vsel %vm979, %v2030, %v2015
    %vm2047 = vcmp.eq.s32.totalorder %v393, 127
    %vm2048 = vcmp.eq.s32.totalorder %v394, 127
    %vm2049 = vcmp.eq.s32.totalorder %v395, 127
    %vm2050 = vcmp.eq.s32.totalorder %v396, 127
    %vm2051 = vcmp.eq.s32.totalorder %v397, 127
    %vm2052 = vcmp.eq.s32.totalorder %v398, 127
    %vm2053 = vcmp.eq.s32.totalorder %v399, 127
    %vm2054 = vcmp.eq.s32.totalorder %v400, 127
    %vm2055 = vcmp.eq.s32.totalorder %v401, 127
    %vm2056 = vcmp.eq.s32.totalorder %v402, 127
    %vm2057 = vcmp.eq.s32.totalorder %v403, 127
    %vm2058 = vcmp.eq.s32.totalorder %v404, 127
    %vm2059 = vcmp.eq.s32.totalorder %v405, 127
    %vm2060 = vcmp.eq.s32.totalorder %v406, 127
    %vm2061 = vcmp.eq.s32.totalorder %v407, 127
    %vm2062 = vcmp.eq.s32.totalorder %v408, 127
    %v2063 = vsel %vm2047, 1, 0
    %v2064 = vsel %vm2048, 1, 0
    %v2065 = vsel %vm2049, 1, 0
    %v2066 = vsel %vm2050, 1, 0
    %v2067 = vsel %vm2051, 1, 0
    %v2068 = vsel %vm2052, 1, 0
    %v2069 = vsel %vm2053, 1, 0
    %v2070 = vsel %vm2054, 1, 0
    %v2071 = vsel %vm2055, 1, 0
    %v2072 = vsel %vm2056, 1, 0
    %v2073 = vsel %vm2057, 1, 0
    %v2074 = vsel %vm2058, 1, 0
    %v2075 = vsel %vm2059, 1, 0
    %v2076 = vsel %vm2060, 1, 0
    %v2077 = vsel %vm2061, 1, 0
    %v2078 = vsel %vm2062, 1, 0
    %vm2079 = vcmp.eq.s32.totalorder %v2063, 1
    %vm2080 = vcmp.eq.s32.totalorder %v2064, 1
    %vm2081 = vcmp.eq.s32.totalorder %v2065, 1
    %vm2082 = vcmp.eq.s32.totalorder %v2066, 1
    %vm2083 = vcmp.eq.s32.totalorder %v2067, 1
    %vm2084 = vcmp.eq.s32.totalorder %v2068, 1
    %vm2085 = vcmp.eq.s32.totalorder %v2069, 1
    %vm2086 = vcmp.eq.s32.totalorder %v2070, 1
    %vm2087 = vcmp.eq.s32.totalorder %v2071, 1
    %vm2088 = vcmp.eq.s32.totalorder %v2072, 1
    %vm2089 = vcmp.eq.s32.totalorder %v2073, 1
    %vm2090 = vcmp.eq.s32.totalorder %v2074, 1
    %vm2091 = vcmp.eq.s32.totalorder %v2075, 1
    %vm2092 = vcmp.eq.s32.totalorder %v2076, 1
    %vm2093 = vcmp.eq.s32.totalorder %v2077, 1
    %vm2094 = vcmp.eq.s32.totalorder %v2078, 1
    %v2095 = vsel %vm2079, 0.0, %v2045
    %v2096 = vsel %vm2080, 0.0, %v2044
    %v2097 = vsel %vm2081, 0.0, %v2043
    %v2098 = vsel %vm2082, 0.0, %v2042
    %v2099 = vsel %vm2083, 0.0, %v2041
    %v2100 = vsel %vm2084, 0.0, %v2040
    %v2101 = vsel %vm2085, 0.0, %v2039
    %v2102 = vsel %vm2086, 0.0, %v2038
    %v2103 = vsel %vm2087, 0.0, %v2037
    %v2104 = vsel %vm2088, 0.0, %v2036
    %v2105 = vsel %vm2089, 0.0, %v2035
    %v2106 = vsel %vm2090, 0.0, %v2034
    %v2107 = vsel %vm2091, 0.0, %v2033
    %v2108 = vsel %vm2092, 0.0, %v2032
    %v2109 = vsel %vm2093, 0.0, %v2031
    %v2110 = vsel %vm2094, 0.0, %v2046
    %2127 = vrot.lane.b32.xlu0 %v2095, 16
    %v2128 = vpop.permute.xlu0 %2127
    %2129 = vrot.lane.b32.xlu0 %v2096, 16
    %v2130 = vpop.permute.xlu0 %2129
    %2131 = vrot.lane.b32.xlu0 %v2097, 16
    %v2132 = vpop.permute.xlu0 %2131
    %2133 = vrot.lane.b32.xlu0 %v2098, 16
    %v2134 = vpop.permute.xlu0 %2133
    %2135 = vrot.lane.b32.xlu0 %v2099, 16
    %v2136 = vpop.permute.xlu0 %2135
    %2137 = vrot.lane.b32.xlu0 %v2100, 16
    %v2138 = vpop.permute.xlu0 %2137
    %2139 = vrot.lane.b32.xlu0 %v2101, 16
    %v2140 = vpop.permute.xlu0 %2139
    %2141 = vrot.lane.b32.xlu0 %v2102, 16
    %v2142 = vpop.permute.xlu0 %2141
    %2143 = vrot.lane.b32.xlu0 %v2103, 16
    %v2144 = vpop.permute.xlu0 %2143
    %2145 = vrot.lane.b32.xlu0 %v2104, 16
    %v2146 = vpop.permute.xlu0 %2145
    %2147 = vrot.lane.b32.xlu0 %v2105, 16
    %v2148 = vpop.permute.xlu0 %2147
    %2149 = vrot.lane.b32.xlu0 %v2106, 16
    %v2150 = vpop.permute.xlu0 %2149
    %2151 = vrot.lane.b32.xlu0 %v2107, 16
    %v2152 = vpop.permute.xlu0 %2151
    %2153 = vrot.lane.b32.xlu0 %v2108, 16
    %v2154 = vpop.permute.xlu0 %2153
    %2155 = vrot.lane.b32.xlu0 %v2109, 16
    %v2156 = vpop.permute.xlu0 %2155
    %2157 = vrot.lane.b32.xlu0 %v2110, 16
    %v2158 = vpop.permute.xlu0 %2157
    %v2175 = vadd.f32 %v1935, %v2128
    %v2176 = vadd.f32 %v1936, %v2130
    %v2177 = vadd.f32 %v1937, %v2132
    %v2178 = vadd.f32 %v1938, %v2134
    %v2179 = vadd.f32 %v1939, %v2136
    %v2180 = vadd.f32 %v1940, %v2138
    %v2181 = vadd.f32 %v1941, %v2140
    %v2182 = vadd.f32 %v1942, %v2142
    %v2183 = vadd.f32 %v1943, %v2144
    %v2184 = vadd.f32 %v1944, %v2146
    %v2185 = vadd.f32 %v1945, %v2148
    %v2186 = vadd.f32 %v1946, %v2150
    %v2187 = vadd.f32 %v1947, %v2152
    %v2188 = vadd.f32 %v1948, %v2154
    %v2189 = vadd.f32 %v1949, %v2156
    %v2190 = vadd.f32 %v1950, %v2158
    %2207 = vrot.lane.b32.xlu0 %v2175, 112
    %v2208 = vpop.permute.xlu0 %2207
    %2209 = vrot.lane.b32.xlu0 %v2176, 112
    %v2210 = vpop.permute.xlu0 %2209
    %2211 = vrot.lane.b32.xlu0 %v2177, 112
    %v2212 = vpop.permute.xlu0 %2211
    %2213 = vrot.lane.b32.xlu0 %v2178, 112
    %v2214 = vpop.permute.xlu0 %2213
    %2215 = vrot.lane.b32.xlu0 %v2179, 112
    %v2216 = vpop.permute.xlu0 %2215
    %2217 = vrot.lane.b32.xlu0 %v2180, 112
    %v2218 = vpop.permute.xlu0 %2217
    %2219 = vrot.lane.b32.xlu0 %v2181, 112
    %v2220 = vpop.permute.xlu0 %2219
    %2221 = vrot.lane.b32.xlu0 %v2182, 112
    %v2222 = vpop.permute.xlu0 %2221
    %2223 = vrot.lane.b32.xlu0 %v2183, 112
    %v2224 = vpop.permute.xlu0 %2223
    %2225 = vrot.lane.b32.xlu0 %v2184, 112
    %v2226 = vpop.permute.xlu0 %2225
    %2227 = vrot.lane.b32.xlu0 %v2185, 112
    %v2228 = vpop.permute.xlu0 %2227
    %2229 = vrot.lane.b32.xlu0 %v2186, 112
    %v2230 = vpop.permute.xlu0 %2229
    %2231 = vrot.lane.b32.xlu0 %v2187, 112
    %v2232 = vpop.permute.xlu0 %2231
    %2233 = vrot.lane.b32.xlu0 %v2188, 112
    %v2234 = vpop.permute.xlu0 %2233
    %2235 = vrot.lane.b32.xlu0 %v2189, 112
    %v2236 = vpop.permute.xlu0 %2235
    %2237 = vrot.lane.b32.xlu0 %v2190, 112
    %v2238 = vpop.permute.xlu0 %2237
    %vm2255 = vcmask 130048
    %2256 = vst.msk [vmem:[#allocation3] sm:$0xff] %vm2255, %v2208
    %2257 = vst.msk [vmem:[#allocation3 + $0x8] sm:$0xff] %vm2255, %v2210
    %2258 = vst.msk [vmem:[#allocation3 + $0x10] sm:$0xff] %vm2255, %v2212
    %2259 = vst.msk [vmem:[#allocation3 + $0x18] sm:$0xff] %vm2255, %v2214
    %2260 = vst.msk [vmem:[#allocation3 + $0x20] sm:$0xff] %vm2255, %v2216
    %2261 = vst.msk [vmem:[#allocation3 + $0x28] sm:$0xff] %vm2255, %v2218
    %2262 = vst.msk [vmem:[#allocation3 + $0x30] sm:$0xff] %vm2255, %v2220
    %2263 = vst.msk [vmem:[#allocation3 + $0x38] sm:$0xff] %vm2255, %v2222
    %2264 = vst.msk [vmem:[#allocation3 + $0x40] sm:$0xff] %vm2255, %v2224
    %2265 = vst.msk [vmem:[#allocation3 + $0x48] sm:$0xff] %vm2255, %v2226
    %2266 = vst.msk [vmem:[#allocation3 + $0x50] sm:$0xff] %vm2255, %v2228
    %2267 = vst.msk [vmem:[#allocation3 + $0x58] sm:$0xff] %vm2255, %v2230
    %2268 = vst.msk [vmem:[#allocation3 + $0x60] sm:$0xff] %vm2255, %v2232
    %2269 = vst.msk [vmem:[#allocation3 + $0x68] sm:$0xff] %vm2255, %v2234
    %2270 = vst.msk [vmem:[#allocation3 + $0x70] sm:$0xff] %vm2255, %v2236
    %2271 = vst.msk [vmem:[#allocation3 + $0x78] sm:$0xff] %vm2255, %v2238
    %v2272 = vld [vmem:[#allocation3] ss:$2 sm:$0xff]
    %s2273 = scalar_lea.vmem [#allocation3], 16
    %v2274 = vld [vmem:[%s2273] ss:$2 sm:$0xff]
    %s2275 = scalar_lea.vmem [#allocation3], 32
    %v2276 = vld [vmem:[%s2275] ss:$2 sm:$0xff]
    %s2277 = scalar_lea.vmem [#allocation3], 48
    %v2278 = vld [vmem:[%s2277] ss:$2 sm:$0xff]
    %s2279 = scalar_lea.vmem [#allocation3], 64
    %v2280 = vld [vmem:[%s2279] ss:$2 sm:$0xff]
    %s2281 = scalar_lea.vmem [#allocation3], 80
    %v2282 = vld [vmem:[%s2281] ss:$2 sm:$0xff]
    %s2283 = scalar_lea.vmem [#allocation3], 96
    %v2284 = vld [vmem:[%s2283] ss:$2 sm:$0xff]
    %s2285 = scalar_lea.vmem [#allocation3], 112
    %v2286 = vld [vmem:[%s2285] ss:$2 sm:$0xff]
    %s2287 = scalar_lea.vmem [#allocation3], 1
    %v2288 = vld [vmem:[%s2287] ss:$2 sm:$0xff]
    %s2289 = scalar_lea.vmem [#allocation3], 17
    %v2290 = vld [vmem:[%s2289] ss:$2 sm:$0xff]
    %s2291 = scalar_lea.vmem [#allocation3], 33
    %v2292 = vld [vmem:[%s2291] ss:$2 sm:$0xff]
    %s2293 = scalar_lea.vmem [#allocation3], 49
    %v2294 = vld [vmem:[%s2293] ss:$2 sm:$0xff]
    %s2295 = scalar_lea.vmem [#allocation3], 65
    %v2296 = vld [vmem:[%s2295] ss:$2 sm:$0xff]
    %s2297 = scalar_lea.vmem [#allocation3], 81
    %v2298 = vld [vmem:[%s2297] ss:$2 sm:$0xff]
    %s2299 = scalar_lea.vmem [#allocation3], 97
    %v2300 = vld [vmem:[%s2299] ss:$2 sm:$0xff]
    %s2301 = scalar_lea.vmem [#allocation3], 113
    %v2302 = vld [vmem:[%s2301] ss:$2 sm:$0xff]
    %v2303 = vrot.slane %v2288, 7
    %v2304 = vrot.slane %v2290, 7
    %v2305 = vrot.slane %v2292, 7
    %v2306 = vrot.slane %v2294, 7
    %v2307 = vrot.slane %v2296, 7
    %v2308 = vrot.slane %v2298, 7
    %v2309 = vrot.slane %v2300, 7
    %v2310 = vrot.slane %v2302, 7
    %v2311 = vsel %vm498, %v2309, %v2310
    %v2312 = vsel %vm498, %v2308, %v2309
    %v2313 = vsel %vm498, %v2307, %v2308
    %v2314 = vsel %vm498, %v2306, %v2307
    %v2315 = vsel %vm498, %v2305, %v2306
    %v2316 = vsel %vm498, %v2304, %v2305
    %v2317 = vsel %vm498, %v2303, %v2304
    %v2318 = vsel %vm498, %v2310, %v2303
    %v2319 = vsel %vm595, -inf, %v2318
    %v2320 = vsel %vm596, -inf, %v2317
    %v2321 = vsel %vm597, -inf, %v2316
    %v2322 = vsel %vm598, -inf, %v2315
    %v2323 = vsel %vm599, -inf, %v2314
    %v2324 = vsel %vm600, -inf, %v2313
    %v2325 = vsel %vm601, -inf, %v2312
    %v2326 = vsel %vm602, -inf, %v2311
    %v2327 = vmax.f32 %v2272, %v2288
    %v2328 = vmax.f32 %v2274, %v2290
    %v2329 = vmax.f32 %v2276, %v2292
    %v2330 = vmax.f32 %v2278, %v2294
    %v2331 = vmax.f32 %v2280, %v2296
    %v2332 = vmax.f32 %v2282, %v2298
    %v2333 = vmax.f32 %v2284, %v2300
    %v2334 = vmax.f32 %v2286, %v2302
    %v2335 = vmax.f32 %v2327, %v2319
    %v2336 = vmax.f32 %v2328, %v2320
    %v2337 = vmax.f32 %v2329, %v2321
    %v2338 = vmax.f32 %v2330, %v2322
    %v2339 = vmax.f32 %v2331, %v2323
    %v2340 = vmax.f32 %v2332, %v2324
    %v2341 = vmax.f32 %v2333, %v2325
    %v2342 = vmax.f32 %v2334, %v2326
    %v2343 = vld [vmem:[%s5] sm:$0xff]
    %v2344 = vld [vmem:[%s5 + $0x8] sm:$0xff]
    %v2346 = vsel %vm2255, %v2335, 0
    %v2349 = vsel %vm2255, %v2336, 0
    %v2352 = vsel %vm2255, %v2337, 0
    %v2355 = vsel %vm2255, %v2338, 0
    %v2358 = vsel %vm2255, %v2339, 0
    %v2361 = vsel %vm2255, %v2340, 0
    %v2364 = vsel %vm2255, %v2341, 0
    %v2367 = vsel %vm2255, %v2342, 0
    %2369 = vmatprep.subr.mxu0 0.0
    %2370 = vmatpush1.msra.mxu0 %v2343
    %2371 = vmatprep.subr.mxu0 0.0
    %2372 = vmatpush1.msra.mxu0 %v2344
    %2373 = vmatprep.subr.mxu0 0.0
    %2374 = vmatpush1.msra.mxu0 0.0
    %2375 = vmatprep.subr.mxu0 0.0
    %2376 = vmatpush1.msra.mxu0 0.0
    %2377 = vmatprep.subr.mxu0 0.0
    %2378 = vmatpush1.msra.mxu0 0.0
    %2379 = vmatprep.subr.mxu0 0.0
    %2380 = vmatpush1.msra.mxu0 0.0
    %2381 = vmatprep.subr.mxu0 0.0
    %2382 = vmatpush1.msra.mxu0 0.0
    %2383 = vmatprep.subr.mxu0 0.0
    %2384 = vmatpush1.msra.mxu0 0.0
    %2385 = vmatprep.subr.mxu0 0.0
    %2386 = vmatpush1.msra.mxu0 0.0
    %2387 = vmatprep.subr.mxu0 0.0
    %2388 = vmatpush1.msra.mxu0 0.0
    %2389 = vmatprep.subr.mxu0 0.0
    %2390 = vmatpush1.msra.mxu0 0.0
    %2391 = vmatprep.subr.mxu0 0.0
    %2392 = vmatpush1.msra.mxu0 0.0
    %2393 = vmatprep.subr.mxu0 0.0
    %2394 = vmatpush1.msra.mxu0 0.0
    %2395 = vmatprep.subr.mxu0 0.0
    %2396 = vmatpush1.msra.mxu0 0.0
    %2397 = vmatprep.subr.mxu0 0.0
    %2398 = vmatpush1.msra.mxu0 0.0
    %2399 = vmatprep.subr.mxu0 0.0
    %2400 = vmatpush1.msra.mxu0 0.0
    %2401 = vmatprep.subr.mxu0 0.0
    %2402 = vmatpush1.msra.mxu0 0.0
    %2403 = vmatprep.subr.mxu0 0.0
    %2404 = vmatpush1.msra.mxu0 0.0
    %2405 = vmatprep.subr.mxu0 0.0
    %2406 = vmatpush1.msra.mxu0 0.0
    %2407 = vmatprep.subr.mxu0 0.0
    %2408 = vmatpush1.msra.mxu0 0.0
    %2409 = vmatprep.subr.mxu0 0.0
    %2410 = vmatpush1.msra.mxu0 0.0
    %2411 = vmatprep.subr.mxu0 0.0
    %2412 = vmatpush1.msra.mxu0 0.0
    %2413 = vmatprep.subr.mxu0 0.0
    %2414 = vmatpush1.msra.mxu0 0.0
    %2415 = vmatprep.subr.mxu0 0.0
    %2416 = vmatpush1.msra.mxu0 0.0
    %2417 = vmatprep.subr.mxu0 0.0
    %2418 = vmatpush1.msra.mxu0 0.0
    %2419 = vmatprep.subr.mxu0 0.0
    %2420 = vmatpush1.msra.mxu0 0.0
    %2421 = vmatprep.subr.mxu0 0.0
    %2422 = vmatpush1.msra.mxu0 0.0
    %2423 = vmatprep.subr.mxu0 0.0
    %2424 = vmatpush1.msra.mxu0 0.0
    %2425 = vmatprep.subr.mxu0 0.0
    %2426 = vmatpush1.msra.mxu0 0.0
    %2427 = vmatprep.subr.mxu0 0.0
    %2428 = vmatpush1.msra.mxu0 0.0
    %2429 = vmatprep.subr.mxu0 0.0
    %2430 = vmatpush1.msra.mxu0 0.0
    %2431 = vmatprep.subr.mxu0 0.0
    %2432 = vmatpush1.msra.mxu0 0.0
    %2433 = vmatprep.mubr.f32.mxu0 0.0
    %2434 = vmatmul.mubr.f32.gmra.mrb[0].mxu0 %v2346
    %v2435 = vpop.f32.mrb[0].mxu0
    %v2436 = vadd.f32 0.0, %v2435
    %v2437 = vpop.f32.mrb[0].mxu0
    %2438 = vmatprep.mubr.f32.mxu0 0.0
    %2439 = vmatmul.mubr.f32.gmra.mrb[0].mxu0 %v2349
    %v2440 = vpop.f32.mrb[0].mxu0
    %v2441 = vadd.f32 0.0, %v2440
    %v2442 = vpop.f32.mrb[0].mxu0
    %2443 = vmatprep.mubr.f32.mxu0 0.0
    %2444 = vmatmul.mubr.f32.gmra.mrb[0].mxu0 %v2352
    %v2445 = vpop.f32.mrb[0].mxu0
    %v2446 = vadd.f32 0.0, %v2445
    %v2447 = vpop.f32.mrb[0].mxu0
    %2448 = vmatprep.mubr.f32.mxu0 0.0
    %2449 = vmatmul.mubr.f32.gmra.mrb[0].mxu0 %v2355
    %v2450 = vpop.f32.mrb[0].mxu0
    %v2451 = vadd.f32 0.0, %v2450
    %v2452 = vpop.f32.mrb[0].mxu0
    %2453 = vmatprep.mubr.f32.mxu0 0.0
    %2454 = vmatmul.mubr.f32.gmra.mrb[0].mxu0 %v2358
    %v2455 = vpop.f32.mrb[0].mxu0
    %v2456 = vadd.f32 0.0, %v2455
    %v2457 = vpop.f32.mrb[0].mxu0
    %2458 = vmatprep.mubr.f32.mxu0 0.0
    %2459 = vmatmul.mubr.f32.gmra.mrb[0].mxu0 %v2361
    %v2460 = vpop.f32.mrb[0].mxu0
    %v2461 = vadd.f32 0.0, %v2460
    %v2462 = vpop.f32.mrb[0].mxu0
    %2463 = vmatprep.mubr.f32.mxu0 0.0
    %2464 = vmatmul.mubr.f32.gmra.mrb[0].mxu0 %v2364
    %v2465 = vpop.f32.mrb[0].mxu0
    %v2466 = vadd.f32 0.0, %v2465
    %v2467 = vpop.f32.mrb[0].mxu0
    %2468 = vmatprep.mubr.f32.mxu0 0.0
    %2469 = vmatmul.mubr.f32.gmra.mrb[0].mxu0 %v2367
    %v2470 = vpop.f32.mrb[0].mxu0
    %v2471 = vadd.f32 0.0, %v2470
    %v2472 = vpop.f32.mrb[0].mxu0
    %2473 = vdwg.mxu0
    %v2474 = vld [vmem:[%s6] sm:$0x1]
    %v2476 = vlaneseq
    %v2477 = vshrl.u32 %v2476, 7
    %v2478 = vsub.s32 0, %v2477
    %v2479 = vrot.slane %v2474, %v2478
    %2480 = vrot.lane.b32.xlu0 %v2479, 32
    %v2481 = vpop.permute.xlu0 %2480
    %v2483 = vadd.f32 %v2436, %v2481
    %v2484 = vadd.f32 %v2441, %v2481
    %v2485 = vadd.f32 %v2446, %v2481
    %v2486 = vadd.f32 %v2451, %v2481
    %v2487 = vadd.f32 %v2456, %v2481
    %v2488 = vadd.f32 %v2461, %v2481
    %v2489 = vadd.f32 %v2466, %v2481
    %v2490 = vadd.f32 %v2471, %v2481
    %v2491 = vrot.slane %v2436, 7
    %v2492 = vrot.slane %v2441, 7
    %v2493 = vrot.slane %v2446, 7
    %v2494 = vrot.slane %v2451, 7
    %v2495 = vrot.slane %v2456, 7
    %v2496 = vrot.slane %v2461, 7
    %v2497 = vrot.slane %v2466, 7
    %v2498 = vrot.slane %v2471, 7
    %v2499 = vsel %vm498, %v2497, %v2498
    %v2500 = vsel %vm498, %v2496, %v2497
    %v2501 = vsel %vm498, %v2495, %v2496
    %v2502 = vsel %vm498, %v2494, %v2495
    %v2503 = vsel %vm498, %v2493, %v2494
    %v2504 = vsel %vm498, %v2492, %v2493
    %v2505 = vsel %vm498, %v2491, %v2492
    %v2506 = vsel %vm498, %v2498, %v2491
    %v2507 = vsel %vm595, 0.0, %v2506
    %v2508 = vsel %vm596, 0.0, %v2505
    %v2509 = vsel %vm597, 0.0, %v2504
    %v2510 = vsel %vm598, 0.0, %v2503
    %v2511 = vsel %vm599, 0.0, %v2502
    %v2512 = vsel %vm600, 0.0, %v2501
    %v2513 = vsel %vm601, 0.0, %v2500
    %v2514 = vsel %vm602, 0.0, %v2499
    %2523 = vrot.lane.b32.xlu0 %v2507, 32
    %v2524 = vpop.permute.xlu0 %2523
    %2525 = vrot.lane.b32.xlu0 %v2508, 32
    %v2526 = vpop.permute.xlu0 %2525
    %2527 = vrot.lane.b32.xlu0 %v2509, 32
    %v2528 = vpop.permute.xlu0 %2527
    %2529 = vrot.lane.b32.xlu0 %v2510, 32
    %v2530 = vpop.permute.xlu0 %2529
    %2531 = vrot.lane.b32.xlu0 %v2511, 32
    %v2532 = vpop.permute.xlu0 %2531
    %2533 = vrot.lane.b32.xlu0 %v2512, 32
    %v2534 = vpop.permute.xlu0 %2533
    %2535 = vrot.lane.b32.xlu0 %v2513, 32
    %v2536 = vpop.permute.xlu0 %2535
    %2537 = vrot.lane.b32.xlu0 %v2514, 32
    %v2538 = vpop.permute.xlu0 %2537
    %v2547 = vadd.f32 %v2483, %v2524
    %v2548 = vadd.f32 %v2484, %v2526
    %v2549 = vadd.f32 %v2485, %v2528
    %v2550 = vadd.f32 %v2486, %v2530
    %v2551 = vadd.f32 %v2487, %v2532
    %v2552 = vadd.f32 %v2488, %v2534
    %v2553 = vadd.f32 %v2489, %v2536
    %v2554 = vadd.f32 %v2490, %v2538
    %2563 = vrot.lane.b32.xlu0 %v2436, 64
    %v2564 = vpop.permute.xlu0 %2563
    %2565 = vrot.lane.b32.xlu0 %v2441, 64
    %v2566 = vpop.permute.xlu0 %2565
    %2567 = vrot.lane.b32.xlu0 %v2446, 64
    %v2568 = vpop.permute.xlu0 %2567
    %2569 = vrot.lane.b32.xlu0 %v2451, 64
    %v2570 = vpop.permute.xlu0 %2569
    %2571 = vrot.lane.b32.xlu0 %v2456, 64
    %v2572 = vpop.permute.xlu0 %2571
    %2573 = vrot.lane.b32.xlu0 %v2461, 64
    %v2574 = vpop.permute.xlu0 %2573
    %2575 = vrot.lane.b32.xlu0 %v2466, 64
    %v2576 = vpop.permute.xlu0 %2575
    %2577 = vrot.lane.b32.xlu0 %v2471, 64
    %v2578 = vpop.permute.xlu0 %2577
    %v2587 = vrot.slane %v2564, 1
    %v2588 = vrot.slane %v2566, 1
    %v2589 = vrot.slane %v2568, 1
    %v2590 = vrot.slane %v2570, 1
    %v2591 = vrot.slane %v2572, 1
    %v2592 = vrot.slane %v2574, 1
    %v2593 = vrot.slane %v2576, 1
    %v2594 = vrot.slane %v2578, 1
    %v2595 = vsel %vm979, %v2593, %v2594
    %v2596 = vsel %vm979, %v2592, %v2593
    %v2597 = vsel %vm979, %v2591, %v2592
    %v2598 = vsel %vm979, %v2590, %v2591
    %v2599 = vsel %vm979, %v2589, %v2590
    %v2600 = vsel %vm979, %v2588, %v2589
    %v2601 = vsel %vm979, %v2587, %v2588
    %v2602 = vsel %vm979, %v2594, %v2587
    %vm2603 = vcmp.eq.s32.totalorder %v393, 63
    %vm2604 = vcmp.eq.s32.totalorder %v394, 63
    %vm2605 = vcmp.eq.s32.totalorder %v395, 63
    %vm2606 = vcmp.eq.s32.totalorder %v396, 63
    %vm2607 = vcmp.eq.s32.totalorder %v397, 63
    %vm2608 = vcmp.eq.s32.totalorder %v398, 63
    %vm2609 = vcmp.eq.s32.totalorder %v399, 63
    %vm2610 = vcmp.eq.s32.totalorder %v400, 63
    %v2611 = vsel %vm2603, 1, 0
    %v2612 = vsel %vm2604, 1, 0
    %v2613 = vsel %vm2605, 1, 0
    %v2614 = vsel %vm2606, 1, 0
    %v2615 = vsel %vm2607, 1, 0
    %v2616 = vsel %vm2608, 1, 0
    %v2617 = vsel %vm2609, 1, 0
    %v2618 = vsel %vm2610, 1, 0
    %vm2619 = vcmp.eq.s32.totalorder %v2611, 1
    %vm2620 = vcmp.eq.s32.totalorder %v2612, 1
    %vm2621 = vcmp.eq.s32.totalorder %v2613, 1
    %vm2622 = vcmp.eq.s32.totalorder %v2614, 1
    %vm2623 = vcmp.eq.s32.totalorder %v2615, 1
    %vm2624 = vcmp.eq.s32.totalorder %v2616, 1
    %vm2625 = vcmp.eq.s32.totalorder %v2617, 1
    %vm2626 = vcmp.eq.s32.totalorder %v2618, 1
    %v2627 = vsel %vm2619, 0.0, %v2601
    %v2628 = vsel %vm2620, 0.0, %v2600
    %v2629 = vsel %vm2621, 0.0, %v2599
    %v2630 = vsel %vm2622, 0.0, %v2598
    %v2631 = vsel %vm2623, 0.0, %v2597
    %v2632 = vsel %vm2624, 0.0, %v2596
    %v2633 = vsel %vm2625, 0.0, %v2595
    %v2634 = vsel %vm2626, 0.0, %v2602
    %2643 = vrot.lane.b32.xlu0 %v2627, 32
    %v2644 = vpop.permute.xlu0 %2643
    %2645 = vrot.lane.b32.xlu0 %v2628, 32
    %v2646 = vpop.permute.xlu0 %2645
    %2647 = vrot.lane.b32.xlu0 %v2629, 32
    %v2648 = vpop.permute.xlu0 %2647
    %2649 = vrot.lane.b32.xlu0 %v2630, 32
    %v2650 = vpop.permute.xlu0 %2649
    %2651 = vrot.lane.b32.xlu0 %v2631, 32
    %v2652 = vpop.permute.xlu0 %2651
    %2653 = vrot.lane.b32.xlu0 %v2632, 32
    %v2654 = vpop.permute.xlu0 %2653
    %2655 = vrot.lane.b32.xlu0 %v2633, 32
    %v2656 = vpop.permute.xlu0 %2655
    %2657 = vrot.lane.b32.xlu0 %v2634, 32
    %v2658 = vpop.permute.xlu0 %2657
    %v2667 = vadd.f32 %v2547, %v2644
    %v2668 = vadd.f32 %v2548, %v2646
    %v2669 = vadd.f32 %v2549, %v2648
    %v2670 = vadd.f32 %v2550, %v2650
    %v2671 = vadd.f32 %v2551, %v2652
    %v2672 = vadd.f32 %v2552, %v2654
    %v2673 = vadd.f32 %v2553, %v2656
    %v2674 = vadd.f32 %v2554, %v2658
    %2683 = vrot.lane.b32.xlu0 %v2667, 96
    %v2684 = vpop.permute.xlu0 %2683
    %2685 = vrot.lane.b32.xlu0 %v2668, 96
    %v2686 = vpop.permute.xlu0 %2685
    %2687 = vrot.lane.b32.xlu0 %v2669, 96
    %v2688 = vpop.permute.xlu0 %2687
    %2689 = vrot.lane.b32.xlu0 %v2670, 96
    %v2690 = vpop.permute.xlu0 %2689
    %2691 = vrot.lane.b32.xlu0 %v2671, 96
    %v2692 = vpop.permute.xlu0 %2691
    %2693 = vrot.lane.b32.xlu0 %v2672, 96
    %v2694 = vpop.permute.xlu0 %2693
    %2695 = vrot.lane.b32.xlu0 %v2673, 96
    %v2696 = vpop.permute.xlu0 %2695
    %2697 = vrot.lane.b32.xlu0 %v2674, 96
    %v2698 = vpop.permute.xlu0 %2697
    %vm2707 = vcmask 261120
    %2708 = vst.msk [vmem:[#allocation4] sm:$0xff] %vm2707, %v2684
    %2709 = vst.msk [vmem:[#allocation4 + $0x8] sm:$0xff] %vm2707, %v2686
    %2710 = vst.msk [vmem:[#allocation4 + $0x10] sm:$0xff] %vm2707, %v2688
    %2711 = vst.msk [vmem:[#allocation4 + $0x18] sm:$0xff] %vm2707, %v2690
    %2712 = vst.msk [vmem:[#allocation4 + $0x20] sm:$0xff] %vm2707, %v2692
    %2713 = vst.msk [vmem:[#allocation4 + $0x28] sm:$0xff] %vm2707, %v2694
    %2714 = vst.msk [vmem:[#allocation4 + $0x30] sm:$0xff] %vm2707, %v2696
    %2715 = vst.msk [vmem:[#allocation4 + $0x38] sm:$0xff] %vm2707, %v2698
    %v2716 = vld [vmem:[#allocation4] ss:$2 sm:$0xff]
    %s2717 = scalar_lea.vmem [#allocation4], 16
    %v2718 = vld [vmem:[%s2717] ss:$2 sm:$0xff]
    %s2719 = scalar_lea.vmem [#allocation4], 32
    %v2720 = vld [vmem:[%s2719] ss:$2 sm:$0xff]
    %s2721 = scalar_lea.vmem [#allocation4], 48
    %v2722 = vld [vmem:[%s2721] ss:$2 sm:$0xff]
    %s2723 = scalar_lea.vmem [#allocation4], 1
    %v2724 = vld [vmem:[%s2723] ss:$2 sm:$0xff]
    %s2725 = scalar_lea.vmem [#allocation4], 17
    %v2726 = vld [vmem:[%s2725] ss:$2 sm:$0xff]
    %s2727 = scalar_lea.vmem [#allocation4], 33
    %v2728 = vld [vmem:[%s2727] ss:$2 sm:$0xff]
    %s2729 = scalar_lea.vmem [#allocation4], 49
    %v2730 = vld [vmem:[%s2729] ss:$2 sm:$0xff]
    %v2731 = vrot.slane %v2724, 7
    %v2732 = vrot.slane %v2726, 7
    %v2733 = vrot.slane %v2728, 7
    %v2734 = vrot.slane %v2730, 7
    %v2735 = vsel %vm498, %v2733, %v2734
    %v2736 = vsel %vm498, %v2732, %v2733
    %v2737 = vsel %vm498, %v2731, %v2732
    %v2738 = vsel %vm498, %v2734, %v2731
    %v2739 = vsel %vm595, -inf, %v2738
    %v2740 = vsel %vm596, -inf, %v2737
    %v2741 = vsel %vm597, -inf, %v2736
    %v2742 = vsel %vm598, -inf, %v2735
    %v2743 = vmax.f32 %v2716, %v2724
    %v2744 = vmax.f32 %v2718, %v2726
    %v2745 = vmax.f32 %v2720, %v2728
    %v2746 = vmax.f32 %v2722, %v2730
    %v2747 = vmax.f32 %v2743, %v2739
    %v2748 = vmax.f32 %v2744, %v2740
    %v2749 = vmax.f32 %v2745, %v2741
    %v2750 = vmax.f32 %v2746, %v2742
    %v2751 = vld [vmem:[%s7] sm:$0xff]
    %v2752 = vld [vmem:[%s7 + $0x8] sm:$0xff]
    %v2753 = vld [vmem:[%s7 + $0x10] sm:$0xff]
    %v2754 = vld [vmem:[%s7 + $0x18] sm:$0xff]
    %v2755 = vld [vmem:[%s7 + $0x20] sm:$0xff]
    %v2756 = vld [vmem:[%s7 + $0x28] sm:$0xff]
    %v2757 = vld [vmem:[%s7 + $0x30] sm:$0xff]
    %v2758 = vld [vmem:[%s7 + $0x38] sm:$0xff]
    %v2760 = vsel %vm2707, %v2747, 0
    %v2763 = vsel %vm2707, %v2748, 0
    %v2766 = vsel %vm2707, %v2749, 0
    %v2769 = vsel %vm2707, %v2750, 0
    %2771 = vmatprep.subr.mxu0 %v2752
    %2772 = vmatpush1.msra.mxu0 %v2751
    %2773 = vmatprep.subr.mxu0 %v2754
    %2774 = vmatpush1.msra.mxu0 %v2753
    %2775 = vmatprep.subr.mxu0 %v2756
    %2776 = vmatpush1.msra.mxu0 %v2755
    %2777 = vmatprep.subr.mxu0 %v2758
    %2778 = vmatpush1.msra.mxu0 %v2757
    %2779 = vmatprep.subr.mxu0 0.0
    %2780 = vmatpush1.msra.mxu0 0.0
    %2781 = vmatprep.subr.mxu0 0.0
    %2782 = vmatpush1.msra.mxu0 0.0
    %2783 = vmatprep.subr.mxu0 0.0
    %2784 = vmatpush1.msra.mxu0 0.0
    %2785 = vmatprep.subr.mxu0 0.0
    %2786 = vmatpush1.msra.mxu0 0.0
    %2787 = vmatprep.subr.mxu0 0.0
    %2788 = vmatpush1.msra.mxu0 0.0
    %2789 = vmatprep.subr.mxu0 0.0
    %2790 = vmatpush1.msra.mxu0 0.0
    %2791 = vmatprep.subr.mxu0 0.0
    %2792 = vmatpush1.msra.mxu0 0.0
    %2793 = vmatprep.subr.mxu0 0.0
    %2794 = vmatpush1.msra.mxu0 0.0
    %2795 = vmatprep.subr.mxu0 0.0
    %2796 = vmatpush1.msra.mxu0 0.0
    %2797 = vmatprep.subr.mxu0 0.0
    %2798 = vmatpush1.msra.mxu0 0.0
    %2799 = vmatprep.subr.mxu0 0.0
    %2800 = vmatpush1.msra.mxu0 0.0
    %2801 = vmatprep.subr.mxu0 0.0
    %2802 = vmatpush1.msra.mxu0 0.0
    %2803 = vmatprep.subr.mxu0 0.0
    %2804 = vmatpush1.msra.mxu0 0.0
    %2805 = vmatprep.subr.mxu0 0.0
    %2806 = vmatpush1.msra.mxu0 0.0
    %2807 = vmatprep.subr.mxu0 0.0
    %2808 = vmatpush1.msra.mxu0 0.0
    %2809 = vmatprep.subr.mxu0 0.0
    %2810 = vmatpush1.msra.mxu0 0.0
    %2811 = vmatprep.subr.mxu0 0.0
    %2812 = vmatpush1.msra.mxu0 0.0
    %2813 = vmatprep.subr.mxu0 0.0
    %2814 = vmatpush1.msra.mxu0 0.0
    %2815 = vmatprep.subr.mxu0 0.0
    %2816 = vmatpush1.msra.mxu0 0.0
    %2817 = vmatprep.subr.mxu0 0.0
    %2818 = vmatpush1.msra.mxu0 0.0
    %2819 = vmatprep.subr.mxu0 0.0
    %2820 = vmatpush1.msra.mxu0 0.0
    %2821 = vmatprep.subr.mxu0 0.0
    %2822 = vmatpush1.msra.mxu0 0.0
    %2823 = vmatprep.subr.mxu0 0.0
    %2824 = vmatpush1.msra.mxu0 0.0
    %2825 = vmatprep.subr.mxu0 0.0
    %2826 = vmatpush1.msra.mxu0 0.0
    %2827 = vmatprep.subr.mxu0 0.0
    %2828 = vmatpush1.msra.mxu0 0.0
    %2829 = vmatprep.subr.mxu0 0.0
    %2830 = vmatpush1.msra.mxu0 0.0
    %2831 = vmatprep.subr.mxu0 0.0
    %2832 = vmatpush1.msra.mxu0 0.0
    %2833 = vmatprep.subr.mxu0 0.0
    %2834 = vmatpush1.msra.mxu0 0.0
    %2835 = vmatprep.mubr.f32.mxu0 0.0
    %2836 = vmatmul.mubr.f32.gmra.mrb[0].mxu0 %v2760
    %v2837 = vpop.f32.mrb[0].mxu0
    %v2838 = vadd.f32 0.0, %v2837
    %v2839 = vpop.f32.mrb[0].mxu0
    %v2840 = vadd.f32 0.0, %v2839
    %2841 = vmatprep.mubr.f32.mxu0 0.0
    %2842 = vmatmul.mubr.f32.gmra.mrb[0].mxu0 %v2763
    %v2843 = vpop.f32.mrb[0].mxu0
    %v2844 = vadd.f32 0.0, %v2843
    %v2845 = vpop.f32.mrb[0].mxu0
    %v2846 = vadd.f32 0.0, %v2845
    %2847 = vmatprep.mubr.f32.mxu0 0.0
    %2848 = vmatmul.mubr.f32.gmra.mrb[0].mxu0 %v2766
    %v2849 = vpop.f32.mrb[0].mxu0
    %v2850 = vadd.f32 0.0, %v2849
    %v2851 = vpop.f32.mrb[0].mxu0
    %v2852 = vadd.f32 0.0, %v2851
    %2853 = vmatprep.mubr.f32.mxu0 0.0
    %2854 = vmatmul.mubr.f32.gmra.mrb[0].mxu0 %v2769
    %v2855 = vpop.f32.mrb[0].mxu0
    %v2856 = vadd.f32 0.0, %v2855
    %v2857 = vpop.f32.mrb[0].mxu0
    %v2858 = vadd.f32 0.0, %v2857
    %2859 = vdwg.mxu0
    %v2860 = vld [vmem:[%s8] sm:$0x1]
    %v2862 = vlaneseq
    %v2863 = vshrl.u32 %v2862, 7
    %v2864 = vsub.s32 0, %v2863
    %v2865 = vrot.slane %v2860, %v2864
    %2866 = vrot.lane.b32.xlu0 %v2865, 64
    %v2867 = vpop.permute.xlu0 %2866
    %v2869 = vadd.f32 %v2838, %v2867
    %v2870 = vadd.f32 %v2844, %v2867
    %v2871 = vadd.f32 %v2850, %v2867
    %v2872 = vadd.f32 %v2856, %v2867
    %v2873 = vrot.slane %v2838, 7
    %v2874 = vrot.slane %v2844, 7
    %v2875 = vrot.slane %v2850, 7
    %v2876 = vrot.slane %v2856, 7
    %v2877 = vsel %vm498, %v2875, %v2876
    %v2878 = vsel %vm498, %v2874, %v2875
    %v2879 = vsel %vm498, %v2873, %v2874
    %v2880 = vsel %vm498, %v2876, %v2873
    %v2881 = vsel %vm595, 0.0, %v2880
    %v2882 = vsel %vm596, 0.0, %v2879
    %v2883 = vsel %vm597, 0.0, %v2878
    %v2884 = vsel %vm598, 0.0, %v2877
    %2889 = vrot.lane.b32.xlu0 %v2881, 64
    %v2890 = vpop.permute.xlu0 %2889
    %2891 = vrot.lane.b32.xlu0 %v2882, 64
    %v2892 = vpop.permute.xlu0 %2891
    %2893 = vrot.lane.b32.xlu0 %v2883, 64
    %v2894 = vpop.permute.xlu0 %2893
    %2895 = vrot.lane.b32.xlu0 %v2884, 64
    %v2896 = vpop.permute.xlu0 %2895
    %v2901 = vadd.f32 %v2869, %v2890
    %v2902 = vadd.f32 %v2870, %v2892
    %v2903 = vadd.f32 %v2871, %v2894
    %v2904 = vadd.f32 %v2872, %v2896
    %v2905 = vrot.slane %v2840, 1
    %v2906 = vrot.slane %v2846, 1
    %v2907 = vrot.slane %v2852, 1
    %v2908 = vrot.slane %v2858, 1
    %v2909 = vsel %vm979, %v2907, %v2908
    %v2910 = vsel %vm979, %v2906, %v2907
    %v2911 = vsel %vm979, %v2905, %v2906
    %v2912 = vsel %vm979, %v2908, %v2905
    %vm2913 = vcmp.eq.s32.totalorder %v393, 31
    %vm2914 = vcmp.eq.s32.totalorder %v394, 31
    %vm2915 = vcmp.eq.s32.totalorder %v395, 31
    %vm2916 = vcmp.eq.s32.totalorder %v396, 31
    %v2917 = vsel %vm2913, 1, 0
    %v2918 = vsel %vm2914, 1, 0
    %v2919 = vsel %vm2915, 1, 0
    %v2920 = vsel %vm2916, 1, 0
    %vm2921 = vcmp.eq.s32.totalorder %v2917, 1
    %vm2922 = vcmp.eq.s32.totalorder %v2918, 1
    %vm2923 = vcmp.eq.s32.totalorder %v2919, 1
    %vm2924 = vcmp.eq.s32.totalorder %v2920, 1
    %v2925 = vsel %vm2921, 0.0, %v2911
    %v2926 = vsel %vm2922, 0.0, %v2910
    %v2927 = vsel %vm2923, 0.0, %v2909
    %v2928 = vsel %vm2924, 0.0, %v2912
    %2933 = vrot.lane.b32.xlu0 %v2925, 64
    %v2934 = vpop.permute.xlu0 %2933
    %2935 = vrot.lane.b32.xlu0 %v2926, 64
    %v2936 = vpop.permute.xlu0 %2935
    %2937 = vrot.lane.b32.xlu0 %v2927, 64
    %v2938 = vpop.permute.xlu0 %2937
    %2939 = vrot.lane.b32.xlu0 %v2928, 64
    %v2940 = vpop.permute.xlu0 %2939
    %v2945 = vadd.f32 %v2901, %v2934
    %v2946 = vadd.f32 %v2902, %v2936
    %v2947 = vadd.f32 %v2903, %v2938
    %v2948 = vadd.f32 %v2904, %v2940
    %2953 = vrot.lane.b32.xlu0 %v2945, 64
    %v2954 = vpop.permute.xlu0 %2953
    %2955 = vrot.lane.b32.xlu0 %v2946, 64
    %v2956 = vpop.permute.xlu0 %2955
    %2957 = vrot.lane.b32.xlu0 %v2947, 64
    %v2958 = vpop.permute.xlu0 %2957
    %2959 = vrot.lane.b32.xlu0 %v2948, 64
    %v2960 = vpop.permute.xlu0 %2959
    %vm2965 = vcmask 523264
    %2966 = vst.msk [vmem:[#allocation5] sm:$0xff] %vm2965, %v2954
    %2967 = vst.msk [vmem:[#allocation5 + $0x8] sm:$0xff] %vm2965, %v2956
    %2968 = vst.msk [vmem:[#allocation5 + $0x10] sm:$0xff] %vm2965, %v2958
    %2969 = vst.msk [vmem:[#allocation5 + $0x18] sm:$0xff] %vm2965, %v2960
    %v2970 = vld [vmem:[#allocation5] ss:$2 sm:$0xff]
    %s2971 = scalar_lea.vmem [#allocation5], 16
    %v2972 = vld [vmem:[%s2971] ss:$2 sm:$0xff]
    %s2973 = scalar_lea.vmem [#allocation5], 1
    %v2974 = vld [vmem:[%s2973] ss:$2 sm:$0xff]
    %s2975 = scalar_lea.vmem [#allocation5], 17
    %v2976 = vld [vmem:[%s2975] ss:$2 sm:$0xff]
    %v2977 = vrot.slane %v2974, 7
    %v2978 = vrot.slane %v2976, 7
    %v2979 = vsel %vm498, %v2977, %v2978
    %v2980 = vsel %vm498, %v2978, %v2977
    %v2981 = vsel %vm595, -inf, %v2980
    %v2982 = vsel %vm596, -inf, %v2979
    %v2983 = vmax.f32 %v2970, %v2974
    %v2984 = vmax.f32 %v2972, %v2976
    %v2985 = vmax.f32 %v2983, %v2981
    %v2986 = vmax.f32 %v2984, %v2982
    %2989 = vrot.lane.b32.xlu0 %v2985, 96
    %v2990 = vpop.permute.xlu0 %2989
    %2991 = vrot.lane.b32.xlu0 %v2986, 96
    %v2992 = vpop.permute.xlu0 %2991
    %v2995 = vsub.f32 %v2985, %v2990
    %v2996 = vsub.f32 %v2986, %v2992
    %v2997 = vmul.f32 %v2995, %v2995
    %v2998 = vmul.f32 %v2996, %v2996
    %v2999 = vsel %vm2707, %v2997, 0.0
    %3000 = vadd.xlane.f32.xlu0 %v2999
    %v3001 = vpop.xlane.xlu0 %3000
    %v3002 = vsel %vm2707, %v2998, 0.0
    %3003 = vadd.xlane.f32.xlu0 %v3002
    %v3004 = vpop.xlane.xlu0 %3003
    %v3005 = vadd.f32 %v3001, %v3004
    %v3006 = vrot.slane %v3005, 4
    %v3007 = vadd.f32 %v3005, %v3006
    %v3008 = vrot.slane %v3007, 2
    %v3009 = vadd.f32 %v3007, %v3008
    %v3010 = vrot.slane %v3009, 1
    %v3011 = vadd.f32 %v3009, %v3010
    %v3012 = vmul.f32 %v3011, 0.5
    %v3013 = vsub.f32 0.0, %v3012
    %v3014 = vmul.f32 %v3013, 1.442695
    %v3015 = vpow.pop %v3014
    %v3016 = vadd.f32 %v3015, 1.0
    %v3017 = vrcp.pop %v3016
    %v3018 = vmul.f32 1.0, %v3017
    %vm3019 = vcmask 0
    %3020 = vst.msk [vmem:[#allocation6] sm:$0x1] %vm3019, %v3018
    // Predicated region
    $region38: #{fewshot_cnn_forward.1} parent=1 // pred_check
      _
    $region39: #{fewshot_cnn_forward.1} parent=1 // pred_check_branch
      %3022 = sbr.rel (0) target = $region41
    $region40: #{fewshot_cnn_forward.1} parent=1 // pred_region
      %s3024 = ssub.s32 16, 16
      %3025 = vsyncadd [#allocation7], %s3024
      %s3027 = sshll.u32 [#allocation6], 4
      %s3028 = int_to_ptr.vmem [resolvable:$true] %s3027
      %3030 = dma.vmem_to_hbm [thread:$0]  %s3028, 16, %s9, [#allocation7]
    $region41: #{fewshot_cnn_forward.1} parent=1 // pred_fallthru
      _
    // Predicated region
    $region42: #{fewshot_cnn_forward.1} parent=1 // pred_check
      _
    $region43: #{fewshot_cnn_forward.1} parent=1 // pred_check_branch
      %3032 = sbr.rel (0) target = $region45
    $region44: #{fewshot_cnn_forward.1} parent=1 // pred_region
      %3033 = dma.done [#allocation7], 16
    $region45: #{fewshot_cnn_forward.1} parent=1 // pred_fallthru
      _
    %3034 = vsyncpa [#allocation7], 1

</llo_original>
